<compile_context>
chip_gen: v5e
topology: v5e:2x2
jax: 0.10.0
libtpu: 0.0.40
codegen_flags: <defaults>
</compile_context>

<pallas_src>
import functools

import jax
import jax.numpy as jnp
from jax import lax
from jax.experimental import pallas as pl
from jax.experimental.pallas import tpu as pltpu


# -----------------------------------------------------------------------------
# Pallas kernel: embedding gather+renorm, 2-layer LSTM, batch-mean, 2 dense
# -----------------------------------------------------------------------------
def lstm_text_kernel(ids_ref, mn_ref, emb_ref,               # (T*B,1) i32, (1,1), (V,E)
                     wih1_ref, whh1_ref, b1_ref,             # (E,4H), (H,4H), (1,4H)
                     wih2_ref, whh2_ref, b2_ref,             # (H,4H), (H,4H), (1,4H)
                     wl1_ref, bl1_ref,                       # (H,D), (1,D)
                     wl2_ref, bl2_ref,                       # (D,Vp), (1,Vp)
                     logits_ref, h_ref, c_ref,               # (T,Vp), (B,H), (B,H)
                     h1_seq_ref, h2_seq_ref,                 # scratch: (T*B,H) each
                     *, T, B, H, V, mxu_dtype):
    TB = T * B

    def mxu(a, b):
        # Bulk (non-recurrent) matmuls; operands optionally cast to bf16 for the
        # v6e/v7x MXU fast path, accumulation always f32.
        return jnp.dot(a.astype(mxu_dtype), b.astype(mxu_dtype),
                       preferred_element_type=jnp.float32)

    # ---- Fused embedding lookup (one-hot matmul gather) + max_norm renorm ----
    ids = ids_ref[...]                                                   # (TB,1) i32
    onehot = (ids == lax.broadcasted_iota(jnp.int32, (TB, V), 1)).astype(jnp.float32)
    emb = jnp.dot(onehot, emb_ref[...], preferred_element_type=jnp.float32)  # (TB,E)
    norm = jnp.sqrt(jnp.sum(emb * emb, axis=-1, keepdims=True))          # (TB,1)
    max_norm = mn_ref[...]                                               # (1,1)
    emb = emb * jnp.where(norm > max_norm, max_norm / (norm + 1e-7), 1.0)

    # ---- Hoisted layer-1 input projection: ONE matmul over all timesteps ----
    gin1 = mxu(emb, wih1_ref[...]) + b1_ref[...]                         # (TB,4H)

    whh1 = whh1_ref[...]
    whh2 = whh2_ref[...]

    def gates(g):
        # Gate columns were pre-permuted in the wrapper to [i, f, o, g]:
        # one sigmoid on a contiguous 3H slab + one tanh on the last H.
        sig = jax.nn.sigmoid(g[:, :3 * H])
        return sig[:, :H], sig[:, H:2 * H], sig[:, 2 * H:3 * H], jnp.tanh(g[:, 3 * H:])

    # ---- Pass 1: layer-1 recurrence (only h1 @ whh1 on the serial path) ----
    h1 = jnp.zeros((B, H), jnp.float32)
    c1 = jnp.zeros((B, H), jnp.float32)
    for t in range(T):                        # T is a static trace-time constant
        g1 = gin1[t * B:(t + 1) * B, :] + jnp.dot(
            h1, whh1, preferred_element_type=jnp.float32)
        i, f, o, g = gates(g1)
        c1 = f * c1 + i * g
        h1 = o * jnp.tanh(c1)
        h1_seq_ref[t * B:(t + 1) * B, :] = h1            # static-offset store

    # ---- Hoisted layer-2 input projection: ONE matmul over the h1 sequence ----
    gin2 = mxu(h1_seq_ref[...], wih2_ref[...]) + b2_ref[...]             # (TB,4H)

    # ---- Pass 2: layer-2 recurrence ----
    h2 = jnp.zeros((B, H), jnp.float32)
    c2 = jnp.zeros((B, H), jnp.float32)
    for t in range(T):
        g2 = gin2[t * B:(t + 1) * B, :] + jnp.dot(
            h2, whh2, preferred_element_type=jnp.float32)
        i, f, o, g = gates(g2)
        c2 = f * c2 + i * g
        h2 = o * jnp.tanh(c2)
        h2_seq_ref[t * B:(t + 1) * B, :] = h2

    # ---- Batch mean over B as ONE tiny matmul after the loop (all 2-D ops,
    # ---- no per-step XLU reductions / register concat), then the two dense
    # ---- layers and a single lane-dense logits store.
    row = lax.broadcasted_iota(jnp.int32, (T, TB), 0)
    col = lax.broadcasted_iota(jnp.int32, (T, TB), 1)
    in_group = (col >= row * B) & (col < (row + 1) * B)
    avg = jnp.where(in_group, 1.0 / B, 0.0)                              # (T,TB)
    seq = jnp.dot(avg, h2_seq_ref[...], preferred_element_type=jnp.float32)  # (T,H)

    dense = mxu(seq, wl1_ref[...]) + bl1_ref[...]                        # (T,D)
    logits_ref[...] = mxu(dense, wl2_ref[...]) + bl2_ref[...]            # (T,Vp)
    h_ref[...] = h2
    c_ref[...] = c2


# -----------------------------------------------------------------------------
# Wrapper: weight layout prep (done once) + pallas_call
# -----------------------------------------------------------------------------
def lstm_for_gen_text_forward(x, params, h=None, c=None, *,
                              bulk_matmul_dtype=jnp.float32):
    """x: (B, T) integer token ids.  Returns (logits (T, V), h (1,B,H), c (1,B,H))."""
    del h, c  # the PyTorch module ignores the incoming states in forward()

    w_emb = params["emb"]                     # (V, E)
    B, T = x.shape
    V, E = w_emb.shape
    H = params["whh1"].shape[1]
    D = params["wl1"].shape[0]

    LANE = 128
    Vp = ((V + LANE - 1) // LANE) * LANE      # lane-pad ONLY the vocab/output dim

    # Time-major flattened token ids (tiny int32 VMEM input; gather runs in-kernel).
    ids_tb = x.T.reshape(T * B, 1).astype(jnp.int32)
    mn = jnp.asarray(params["max_norm"], jnp.float32).reshape(1, 1)

    # Pre-transpose weights to (in, 4H) and permute gate columns to [i, f, o, g]
    # (PyTorch stacks gates as [i, f, g, o]).
    def perm_gates(w):                        # w: (4H, in)
        w_t = w.T                             # (in, 4H), cols [i, f, g, o]
        return jnp.concatenate(
            [w_t[:, 0:H], w_t[:, H:2 * H], w_t[:, 3 * H:4 * H], w_t[:, 2 * H:3 * H]],
            axis=1)

    def perm_bias(b):                         # b: (4H,)
        return jnp.concatenate(
            [b[0:H], b[H:2 * H], b[3 * H:4 * H], b[2 * H:3 * H]]).reshape(1, 4 * H)

    wih1_t = perm_gates(params["wih1"])                              # (E, 4H)
    whh1_t = perm_gates(params["whh1"])                              # (H, 4H)
    b1 = perm_bias(params["bih1"] + params["bhh1"])                  # (1, 4H)
    wih2_t = perm_gates(params["wih2"])                              # (H, 4H)
    whh2_t = perm_gates(params["whh2"])                              # (H, 4H)
    b2 = perm_bias(params["bih2"] + params["bhh2"])                  # (1, 4H)

    # Dense weights: D stays unpadded (only the logits lane dim is padded).
    wl1_t = params["wl1"].T.astype(jnp.float32)                      # (H, D)
    bl1 = params["bl1"].reshape(1, D).astype(jnp.float32)            # (1, D)
    wl2_t = jnp.zeros((D, Vp), jnp.float32).at[:, :V].set(params["wl2"].T)
    bl2 = jnp.zeros((1, Vp), jnp.float32).at[0, :V].set(params["bl2"])

    cost = pl.CostEstimate(
        flops=2 * (T * B * V * E                    # one-hot gather matmul
                   + T * B * E * 4 * H              # hoisted layer-1 input proj
                   + T * B * H * 4 * H              # hoisted layer-2 input proj
                   + 2 * T * B * H * 4 * H          # per-step recurrent dots
                   + T * T * B * H                  # batch-mean matmul
                   + T * H * D + T * D * Vp),       # dense + logits
        transcendentals=2 * T * B * 5 * H + T * B,
        bytes_accessed=4 * (T * B + 1 + V * E + E * 4 * H + 3 * H * 4 * H
                            + 2 * 4 * H + H * D + D + D * Vp + Vp
                            + T * Vp + 2 * B * H),
    )

    vmem = pl.BlockSpec(memory_space=pltpu.MemorySpace.VMEM)
    kernel = functools.partial(lstm_text_kernel, T=T, B=B, H=H, V=V,
                               mxu_dtype=bulk_matmul_dtype)

    logits_p, h2, c2 = pl.pallas_call(
        kernel,
        out_shape=(
            jax.ShapeDtypeStruct((T, Vp), jnp.float32),
            jax.ShapeDtypeStruct((B, H), jnp.float32),
            jax.ShapeDtypeStruct((B, H), jnp.float32),
        ),
        in_specs=[vmem] * 13,
        out_specs=(vmem, vmem, vmem),
        scratch_shapes=[
            pltpu.VMEM((T * B, H), jnp.float32),   # h1 sequence (time-major flat)
            pltpu.VMEM((T * B, H), jnp.float32),   # h2 sequence (time-major flat)
        ],
        cost_estimate=cost,
    )(ids_tb, mn, w_emb.astype(jnp.float32), wih1_t, whh1_t, b1,
      wih2_t, whh2_t, b2, wl1_t, bl1, wl2_t, bl2)

    logits = logits_p[:, :V]
    # PyTorch returns h, c of the second LSTM with shape (num_layers=1, B, H).
    return logits, h2[None], c2[None]


# -----------------------------------------------------------------------------
# Deterministic parameter init (synthetic, mirrors the module's __init__ shapes)
# -----------------------------------------------------------------------------
def init_params(key, vocab_size, embedding_dim=2, dense_dim=32, hidden_dim=8,
                max_norm=2.0):
    ks = jax.random.split(key, 14)
    H, E, D, V = hidden_dim, embedding_dim, dense_dim, vocab_size

    def u(k, shape, bound):
        return jax.random.uniform(k, shape, jnp.float32, -bound, bound)

    emb = jax.random.normal(ks[0], (V, E), jnp.float32)
    emb = emb.at[V - 1].set(0.0)                       # padding_idx = vocab_size - 1

    bl = 1.0 / jnp.sqrt(H)
    params = dict(
        emb=emb, max_norm=jnp.float32(max_norm),
        wih1=u(ks[1], (4 * H, E), bl), whh1=u(ks[2], (4 * H, H), bl),
        bih1=u(ks[3], (4 * H,), bl), bhh1=u(ks[4], (4 * H,), bl),
        wih2=u(ks[5], (4 * H, H), bl), whh2=u(ks[6], (4 * H, H), bl),
        bih2=u(ks[7], (4 * H,), bl), bhh2=u(ks[8], (4 * H,), bl),
        wl1=u(ks[9], (D, H), bl), bl1=u(ks[10], (D,), bl),
        wl2=u(ks[11], (V, D), 1.0 / jnp.sqrt(D)), bl2=u(ks[12], (V,), 1.0 / jnp.sqrt(D)),
    )
    return params


# -----------------------------------------------------------------------------
# Pure-JAX reference (mirrors PyTorch forward) for a correctness check
# -----------------------------------------------------------------------------
def reference_forward(x, params):
    w_emb = params["emb"]
    max_norm = params["max_norm"]
    emb = w_emb[x]
    norm = jnp.sqrt(jnp.sum(emb * emb, axis=-1, keepdims=True))
    scale = jnp.where(norm > max_norm, max_norm / (norm + 1e-7), 1.0)
    emb = emb * scale                                   # (B, T, E)

    def lstm_layer(inp, wih, whh, bih, bhh):
        B, T, _ = inp.shape
        H = whh.shape[1]
        h = jnp.zeros((B, H), jnp.float32)
        c = jnp.zeros((B, H), jnp.float32)
        outs = []
        for t in range(T):
            g = inp[:, t, :] @ wih.T + bih + h @ whh.T + bhh
            i, f, gg, o = jnp.split(g, 4, axis=1)
            i, f, o = jax.nn.sigmoid(i), jax.nn.sigmoid(f), jax.nn.sigmoid(o)
            gg = jnp.tanh(gg)
            c = f * c + i * gg
            h = o * jnp.tanh(c)
            outs.append(h)
        return jnp.stack(outs, axis=1), h, c

    out1, _, _ = lstm_layer(emb, params["wih1"], params["whh1"],
                            params["bih1"], params["bhh1"])
    out2, h2, c2 = lstm_layer(out1, params["wih2"], params["whh2"],
                              params["bih2"], params["bhh2"])
    out = out2.mean(axis=0)                             # (T, H)
    out = out @ params["wl1"].T + params["bl1"]
    logits = out @ params["wl2"].T + params["bl2"]
    return logits, h2[None], c2[None]


if __name__ == "__main__":
    vocab_size = 16
    B, T = 2, 8

    key = jax.random.PRNGKey(0)
    kp, kx = jax.random.split(key)
    params = init_params(kp, vocab_size)
    x = jax.random.randint(kx, (B, T), 0, vocab_size, dtype=jnp.int32)

    logits, h, c = lstm_for_gen_text_forward(x, params)
    jax.block_until_ready((logits, h, c))

    ref_logits, ref_h, ref_c = reference_forward(x, params)
    assert logits.shape == (T, vocab_size) and h.shape == (1, B, 8) and c.shape == (1, B, 8)
    assert jnp.allclose(logits, ref_logits, atol=1e-3, rtol=1e-3)
    assert jnp.allclose(h, ref_h, atol=1e-3, rtol=1e-3)
    assert jnp.allclose(c, ref_c, atol=1e-3, rtol=1e-3)

    print("KERNEL_OK")
</pallas_src>

<mosaic_0001>
module attributes {stable_mosaic.version = 11 : i64} {
  func.func @lstm_text_kernel(%arg0: memref<16x1xi32, #tpu.memory_space<vmem>>, %arg1: memref<1x1xf32, #tpu.memory_space<vmem>>, %arg2: memref<16x2xf32, #tpu.memory_space<vmem>>, %arg3: memref<2x32xf32, #tpu.memory_space<vmem>>, %arg4: memref<8x32xf32, #tpu.memory_space<vmem>>, %arg5: memref<1x32xf32, #tpu.memory_space<vmem>>, %arg6: memref<8x32xf32, #tpu.memory_space<vmem>>, %arg7: memref<8x32xf32, #tpu.memory_space<vmem>>, %arg8: memref<1x32xf32, #tpu.memory_space<vmem>>, %arg9: memref<8x32xf32, #tpu.memory_space<vmem>>, %arg10: memref<1x32xf32, #tpu.memory_space<vmem>>, %arg11: memref<32x128xf32, #tpu.memory_space<vmem>>, %arg12: memref<1x128xf32, #tpu.memory_space<vmem>>, %arg13: memref<8x128xf32, #tpu.memory_space<vmem>>, %arg14: memref<2x8xf32, #tpu.memory_space<vmem>>, %arg15: memref<2x8xf32, #tpu.memory_space<vmem>>, %arg16: memref<16x8xf32, #tpu.memory_space<vmem>>, %arg17: memref<16x8xf32, #tpu.memory_space<vmem>>) attributes {dimension_semantics = [], scalar_prefetch = 0 : i64, scratch_operands = 2 : i64, tpu.core_type = #tpu.core_type<tc>} {
    %c0 = arith.constant 0 : index
    %c0_0 = arith.constant 0 : index
    %0 = vector.load %arg0[%c0, %c0_0] : memref<16x1xi32, #tpu.memory_space<vmem>>, vector<16x1xi32>
    %1 = tpu.iota {dimensions = array<i32: 1>} : vector<16x16xi32>
    %2 = vector.broadcast %0 : vector<16x1xi32> to vector<16x16xi32>
    %3 = arith.cmpi eq, %2, %1 : vector<16x16xi32>
    %4 = arith.extui %3 : vector<16x16xi1> to vector<16x16xi32>
    %5 = arith.sitofp %4 : vector<16x16xi32> to vector<16x16xf32>
    %c0_1 = arith.constant 0 : index
    %c0_2 = arith.constant 0 : index
    %6 = vector.load %arg2[%c0_1, %c0_2] : memref<16x2xf32, #tpu.memory_space<vmem>>, vector<16x2xf32>
    %cst = arith.constant dense<0.000000e+00> : vector<16x2xf32>
    %7 = tpu.matmul %5, %6, %cst {dimension_numbers = #tpu.dot_dimension_numbers<[1], [0], [0], [1], [0, 0, 1, 1], [], []>} : vector<16x16xf32>, vector<16x2xf32>, vector<16x2xf32> -> vector<16x2xf32>
    %8 = arith.mulf %7, %7 : vector<16x2xf32>
    %cst_3 = arith.constant dense<0.000000e+00> : vector<16xf32>
    %9 = vector.multi_reduction <add>, %8, %cst_3 [1] : vector<16x2xf32> to vector<16xf32>
    %10 = vector.shape_cast %9 : vector<16xf32> to vector<16x1xf32>
    %11 = math.sqrt %10 : vector<16x1xf32>
    %c0_4 = arith.constant 0 : index
    %c0_5 = arith.constant 0 : index
    %12 = vector.load %arg1[%c0_4, %c0_5] : memref<1x1xf32, #tpu.memory_space<vmem>>, vector<1x1xf32>
    %13 = vector.broadcast %12 : vector<1x1xf32> to vector<16x1xf32>
    %14 = arith.cmpf ogt, %11, %13 : vector<16x1xf32>
    %cst_6 = arith.constant 1.000000e-07 : f32
    %15 = vector.broadcast %cst_6 : f32 to vector<16x1xf32>
    %16 = arith.addf %11, %15 : vector<16x1xf32>
    %17 = vector.broadcast %12 : vector<1x1xf32> to vector<16x1xf32>
    %18 = arith.divf %17, %16 : vector<16x1xf32>
    %cst_7 = arith.constant 1.000000e+00 : f32
    %19 = vector.broadcast %cst_7 : f32 to vector<16x1xf32>
    %20 = arith.select %14, %18, %19 : vector<16x1xi1>, vector<16x1xf32>
    %21 = vector.broadcast %20 : vector<16x1xf32> to vector<16x2xf32>
    %22 = arith.mulf %7, %21 : vector<16x2xf32>
    %c0_8 = arith.constant 0 : index
    %c0_9 = arith.constant 0 : index
    %23 = vector.load %arg3[%c0_8, %c0_9] : memref<2x32xf32, #tpu.memory_space<vmem>>, vector<2x32xf32>
    %cst_10 = arith.constant dense<0.000000e+00> : vector<16x32xf32>
    %24 = tpu.matmul %22, %23, %cst_10 {dimension_numbers = #tpu.dot_dimension_numbers<[1], [0], [0], [1], [0, 0, 1, 1], [], []>} : vector<16x2xf32>, vector<2x32xf32>, vector<16x32xf32> -> vector<16x32xf32>
    %c0_11 = arith.constant 0 : index
    %c0_12 = arith.constant 0 : index
    %25 = vector.load %arg5[%c0_11, %c0_12] : memref<1x32xf32, #tpu.memory_space<vmem>>, vector<1x32xf32>
    %26 = vector.broadcast %25 : vector<1x32xf32> to vector<16x32xf32>
    %27 = arith.addf %24, %26 : vector<16x32xf32>
    %c0_13 = arith.constant 0 : index
    %c0_14 = arith.constant 0 : index
    %28 = vector.load %arg4[%c0_13, %c0_14] : memref<8x32xf32, #tpu.memory_space<vmem>>, vector<8x32xf32>
    %c0_15 = arith.constant 0 : index
    %c0_16 = arith.constant 0 : index
    %29 = vector.load %arg7[%c0_15, %c0_16] : memref<8x32xf32, #tpu.memory_space<vmem>>, vector<8x32xf32>
    %cst_17 = arith.constant 0.000000e+00 : f32
    %30 = vector.broadcast %cst_17 : f32 to vector<2x8xf32>
    %cst_18 = arith.constant 0.000000e+00 : f32
    %31 = vector.broadcast %cst_18 : f32 to vector<2x8xf32>
    %32 = vector.extract_strided_slice %27 {offsets = [0, 0], sizes = [2, 32], strides = [1, 1]} : vector<16x32xf32> to vector<2x32xf32>
    %cst_19 = arith.constant dense<0.000000e+00> : vector<2x32xf32>
    %33 = tpu.matmul %30, %28, %cst_19 {dimension_numbers = #tpu.dot_dimension_numbers<[1], [0], [0], [1], [0, 0, 1, 1], [], []>} : vector<2x8xf32>, vector<8x32xf32>, vector<2x32xf32> -> vector<2x32xf32>
    %34 = arith.addf %32, %33 : vector<2x32xf32>
    %35 = vector.extract_strided_slice %34 {offsets = [0, 0], sizes = [2, 24], strides = [1, 1]} : vector<2x32xf32> to vector<2x24xf32>
    %36 = arith.negf %35 : vector<2x24xf32>
    %37 = math.exp %36 : vector<2x24xf32>
    %cst_20 = arith.constant 1.000000e+00 : f32
    %38 = vector.broadcast %cst_20 : f32 to vector<2x24xf32>
    %39 = arith.addf %38, %37 : vector<2x24xf32>
    %40 = arith.divf %38, %39 : vector<2x24xf32>
    %41 = vector.extract_strided_slice %40 {offsets = [0, 0], sizes = [2, 8], strides = [1, 1]} : vector<2x24xf32> to vector<2x8xf32>
    %42 = vector.extract_strided_slice %40 {offsets = [0, 8], sizes = [2, 8], strides = [1, 1]} : vector<2x24xf32> to vector<2x8xf32>
    %43 = vector.extract_strided_slice %40 {offsets = [0, 16], sizes = [2, 8], strides = [1, 1]} : vector<2x24xf32> to vector<2x8xf32>
    %44 = vector.extract_strided_slice %34 {offsets = [0, 24], sizes = [2, 8], strides = [1, 1]} : vector<2x32xf32> to vector<2x8xf32>
    %45 = math.tanh %44 : vector<2x8xf32>
    %46 = arith.mulf %42, %31 : vector<2x8xf32>
    %47 = arith.mulf %41, %45 : vector<2x8xf32>
    %48 = arith.addf %46, %47 : vector<2x8xf32>
    %49 = math.tanh %48 : vector<2x8xf32>
    %50 = arith.mulf %43, %49 : vector<2x8xf32>
    %c0_21 = arith.constant 0 : index
    %c0_22 = arith.constant 0 : index
    %51 = vector.load %arg16[%c0_21, %c0_22] : memref<16x8xf32, #tpu.memory_space<vmem>>, vector<2x8xf32>
    tpu.vector_store %arg16[%c0_21, %c0_22], %50 {strides = array<i32>} : memref<16x8xf32, #tpu.memory_space<vmem>>, vector<2x8xf32>,
    %52 = vector.extract_strided_slice %27 {offsets = [2, 0], sizes = [2, 32], strides = [1, 1]} : vector<16x32xf32> to vector<2x32xf32>
    %cst_23 = arith.constant dense<0.000000e+00> : vector<2x32xf32>
    %53 = tpu.matmul %50, %28, %cst_23 {dimension_numbers = #tpu.dot_dimension_numbers<[1], [0], [0], [1], [0, 0, 1, 1], [], []>} : vector<2x8xf32>, vector<8x32xf32>, vector<2x32xf32> -> vector<2x32xf32>
    %54 = arith.addf %52, %53 : vector<2x32xf32>
    %55 = vector.extract_strided_slice %54 {offsets = [0, 0], sizes = [2, 24], strides = [1, 1]} : vector<2x32xf32> to vector<2x24xf32>
    %56 = arith.negf %55 : vector<2x24xf32>
    %57 = math.exp %56 : vector<2x24xf32>
    %cst_24 = arith.constant 1.000000e+00 : f32
    %58 = vector.broadcast %cst_24 : f32 to vector<2x24xf32>
    %59 = arith.addf %58, %57 : vector<2x24xf32>
    %60 = arith.divf %58, %59 : vector<2x24xf32>
    %61 = vector.extract_strided_slice %60 {offsets = [0, 0], sizes = [2, 8], strides = [1, 1]} : vector<2x24xf32> to vector<2x8xf32>
    %62 = vector.extract_strided_slice %60 {offsets = [0, 8], sizes = [2, 8], strides = [1, 1]} : vector<2x24xf32> to vector<2x8xf32>
    %63 = vector.extract_strided_slice %60 {offsets = [0, 16], sizes = [2, 8], strides = [1, 1]} : vector<2x24xf32> to vector<2x8xf32>
    %64 = vector.extract_strided_slice %54 {offsets = [0, 24], sizes = [2, 8], strides = [1, 1]} : vector<2x32xf32> to vector<2x8xf32>
    %65 = math.tanh %64 : vector<2x8xf32>
    %66 = arith.mulf %62, %48 : vector<2x8xf32>
    %67 = arith.mulf %61, %65 : vector<2x8xf32>
    %68 = arith.addf %66, %67 : vector<2x8xf32>
    %69 = math.tanh %68 : vector<2x8xf32>
    %70 = arith.mulf %63, %69 : vector<2x8xf32>
    %c2 = arith.constant 2 : index
    %c0_25 = arith.constant 0 : index
    %71 = vector.load %arg16[%c2, %c0_25] : memref<16x8xf32, #tpu.memory_space<vmem>>, vector<2x8xf32>
    tpu.vector_store %arg16[%c2, %c0_25], %70 {strides = array<i32>} : memref<16x8xf32, #tpu.memory_space<vmem>>, vector<2x8xf32>,
    %72 = vector.extract_strided_slice %27 {offsets = [4, 0], sizes = [2, 32], strides = [1, 1]} : vector<16x32xf32> to vector<2x32xf32>
    %cst_26 = arith.constant dense<0.000000e+00> : vector<2x32xf32>
    %73 = tpu.matmul %70, %28, %cst_26 {dimension_numbers = #tpu.dot_dimension_numbers<[1], [0], [0], [1], [0, 0, 1, 1], [], []>} : vector<2x8xf32>, vector<8x32xf32>, vector<2x32xf32> -> vector<2x32xf32>
    %74 = arith.addf %72, %73 : vector<2x32xf32>
    %75 = vector.extract_strided_slice %74 {offsets = [0, 0], sizes = [2, 24], strides = [1, 1]} : vector<2x32xf32> to vector<2x24xf32>
    %76 = arith.negf %75 : vector<2x24xf32>
    %77 = math.exp %76 : vector<2x24xf32>
    %cst_27 = arith.constant 1.000000e+00 : f32
    %78 = vector.broadcast %cst_27 : f32 to vector<2x24xf32>
    %79 = arith.addf %78, %77 : vector<2x24xf32>
    %80 = arith.divf %78, %79 : vector<2x24xf32>
    %81 = vector.extract_strided_slice %80 {offsets = [0, 0], sizes = [2, 8], strides = [1, 1]} : vector<2x24xf32> to vector<2x8xf32>
    %82 = vector.extract_strided_slice %80 {offsets = [0, 8], sizes = [2, 8], strides = [1, 1]} : vector<2x24xf32> to vector<2x8xf32>
    %83 = vector.extract_strided_slice %80 {offsets = [0, 16], sizes = [2, 8], strides = [1, 1]} : vector<2x24xf32> to vector<2x8xf32>
    %84 = vector.extract_strided_slice %74 {offsets = [0, 24], sizes = [2, 8], strides = [1, 1]} : vector<2x32xf32> to vector<2x8xf32>
    %85 = math.tanh %84 : vector<2x8xf32>
    %86 = arith.mulf %82, %68 : vector<2x8xf32>
    %87 = arith.mulf %81, %85 : vector<2x8xf32>
    %88 = arith.addf %86, %87 : vector<2x8xf32>
    %89 = math.tanh %88 : vector<2x8xf32>
    %90 = arith.mulf %83, %89 : vector<2x8xf32>
    %c4 = arith.constant 4 : index
    %c0_28 = arith.constant 0 : index
    %91 = vector.load %arg16[%c4, %c0_28] : memref<16x8xf32, #tpu.memory_space<vmem>>, vector<2x8xf32>
    tpu.vector_store %arg16[%c4, %c0_28], %90 {strides = array<i32>} : memref<16x8xf32, #tpu.memory_space<vmem>>, vector<2x8xf32>,
    %92 = vector.extract_strided_slice %27 {offsets = [6, 0], sizes = [2, 32], strides = [1, 1]} : vector<16x32xf32> to vector<2x32xf32>
    %cst_29 = arith.constant dense<0.000000e+00> : vector<2x32xf32>
    %93 = tpu.matmul %90, %28, %cst_29 {dimension_numbers = #tpu.dot_dimension_numbers<[1], [0], [0], [1], [0, 0, 1, 1], [], []>} : vector<2x8xf32>, vector<8x32xf32>, vector<2x32xf32> -> vector<2x32xf32>
    %94 = arith.addf %92, %93 : vector<2x32xf32>
    %95 = vector.extract_strided_slice %94 {offsets = [0, 0], sizes = [2, 24], strides = [1, 1]} : vector<2x32xf32> to vector<2x24xf32>
    %96 = arith.negf %95 : vector<2x24xf32>
    %97 = math.exp %96 : vector<2x24xf32>
    %cst_30 = arith.constant 1.000000e+00 : f32
    %98 = vector.broadcast %cst_30 : f32 to vector<2x24xf32>
    %99 = arith.addf %98, %97 : vector<2x24xf32>
    %100 = arith.divf %98, %99 : vector<2x24xf32>
    %101 = vector.extract_strided_slice %100 {offsets = [0, 0], sizes = [2, 8], strides = [1, 1]} : vector<2x24xf32> to vector<2x8xf32>
    %102 = vector.extract_strided_slice %100 {offsets = [0, 8], sizes = [2, 8], strides = [1, 1]} : vector<2x24xf32> to vector<2x8xf32>
    %103 = vector.extract_strided_slice %100 {offsets = [0, 16], sizes = [2, 8], strides = [1, 1]} : vector<2x24xf32> to vector<2x8xf32>
    %104 = vector.extract_strided_slice %94 {offsets = [0, 24], sizes = [2, 8], strides = [1, 1]} : vector<2x32xf32> to vector<2x8xf32>
    %105 = math.tanh %104 : vector<2x8xf32>
    %106 = arith.mulf %102, %88 : vector<2x8xf32>
    %107 = arith.mulf %101, %105 : vector<2x8xf32>
    %108 = arith.addf %106, %107 : vector<2x8xf32>
    %109 = math.tanh %108 : vector<2x8xf32>
    %110 = arith.mulf %103, %109 : vector<2x8xf32>
    %c6 = arith.constant 6 : index
    %c0_31 = arith.constant 0 : index
    %111 = vector.load %arg16[%c6, %c0_31] : memref<16x8xf32, #tpu.memory_space<vmem>>, vector<2x8xf32>
    tpu.vector_store %arg16[%c6, %c0_31], %110 {strides = array<i32>} : memref<16x8xf32, #tpu.memory_space<vmem>>, vector<2x8xf32>,
    %112 = vector.extract_strided_slice %27 {offsets = [8, 0], sizes = [2, 32], strides = [1, 1]} : vector<16x32xf32> to vector<2x32xf32>
    %cst_32 = arith.constant dense<0.000000e+00> : vector<2x32xf32>
    %113 = tpu.matmul %110, %28, %cst_32 {dimension_numbers = #tpu.dot_dimension_numbers<[1], [0], [0], [1], [0, 0, 1, 1], [], []>} : vector<2x8xf32>, vector<8x32xf32>, vector<2x32xf32> -> vector<2x32xf32>
    %114 = arith.addf %112, %113 : vector<2x32xf32>
    %115 = vector.extract_strided_slice %114 {offsets = [0, 0], sizes = [2, 24], strides = [1, 1]} : vector<2x32xf32> to vector<2x24xf32>
    %116 = arith.negf %115 : vector<2x24xf32>
    %117 = math.exp %116 : vector<2x24xf32>
    %cst_33 = arith.constant 1.000000e+00 : f32
    %118 = vector.broadcast %cst_33 : f32 to vector<2x24xf32>
    %119 = arith.addf %118, %117 : vector<2x24xf32>
    %120 = arith.divf %118, %119 : vector<2x24xf32>
    %121 = vector.extract_strided_slice %120 {offsets = [0, 0], sizes = [2, 8], strides = [1, 1]} : vector<2x24xf32> to vector<2x8xf32>
    %122 = vector.extract_strided_slice %120 {offsets = [0, 8], sizes = [2, 8], strides = [1, 1]} : vector<2x24xf32> to vector<2x8xf32>
    %123 = vector.extract_strided_slice %120 {offsets = [0, 16], sizes = [2, 8], strides = [1, 1]} : vector<2x24xf32> to vector<2x8xf32>
    %124 = vector.extract_strided_slice %114 {offsets = [0, 24], sizes = [2, 8], strides = [1, 1]} : vector<2x32xf32> to vector<2x8xf32>
    %125 = math.tanh %124 : vector<2x8xf32>
    %126 = arith.mulf %122, %108 : vector<2x8xf32>
    %127 = arith.mulf %121, %125 : vector<2x8xf32>
    %128 = arith.addf %126, %127 : vector<2x8xf32>
    %129 = math.tanh %128 : vector<2x8xf32>
    %130 = arith.mulf %123, %129 : vector<2x8xf32>
    %c8 = arith.constant 8 : index
    %c0_34 = arith.constant 0 : index
    %131 = vector.load %arg16[%c8, %c0_34] : memref<16x8xf32, #tpu.memory_space<vmem>>, vector<2x8xf32>
    tpu.vector_store %arg16[%c8, %c0_34], %130 {strides = array<i32>} : memref<16x8xf32, #tpu.memory_space<vmem>>, vector<2x8xf32>,
    %132 = vector.extract_strided_slice %27 {offsets = [10, 0], sizes = [2, 32], strides = [1, 1]} : vector<16x32xf32> to vector<2x32xf32>
    %cst_35 = arith.constant dense<0.000000e+00> : vector<2x32xf32>
    %133 = tpu.matmul %130, %28, %cst_35 {dimension_numbers = #tpu.dot_dimension_numbers<[1], [0], [0], [1], [0, 0, 1, 1], [], []>} : vector<2x8xf32>, vector<8x32xf32>, vector<2x32xf32> -> vector<2x32xf32>
    %134 = arith.addf %132, %133 : vector<2x32xf32>
    %135 = vector.extract_strided_slice %134 {offsets = [0, 0], sizes = [2, 24], strides = [1, 1]} : vector<2x32xf32> to vector<2x24xf32>
    %136 = arith.negf %135 : vector<2x24xf32>
    %137 = math.exp %136 : vector<2x24xf32>
    %cst_36 = arith.constant 1.000000e+00 : f32
    %138 = vector.broadcast %cst_36 : f32 to vector<2x24xf32>
    %139 = arith.addf %138, %137 : vector<2x24xf32>
    %140 = arith.divf %138, %139 : vector<2x24xf32>
    %141 = vector.extract_strided_slice %140 {offsets = [0, 0], sizes = [2, 8], strides = [1, 1]} : vector<2x24xf32> to vector<2x8xf32>
    %142 = vector.extract_strided_slice %140 {offsets = [0, 8], sizes = [2, 8], strides = [1, 1]} : vector<2x24xf32> to vector<2x8xf32>
    %143 = vector.extract_strided_slice %140 {offsets = [0, 16], sizes = [2, 8], strides = [1, 1]} : vector<2x24xf32> to vector<2x8xf32>
    %144 = vector.extract_strided_slice %134 {offsets = [0, 24], sizes = [2, 8], strides = [1, 1]} : vector<2x32xf32> to vector<2x8xf32>
    %145 = math.tanh %144 : vector<2x8xf32>
    %146 = arith.mulf %142, %128 : vector<2x8xf32>
    %147 = arith.mulf %141, %145 : vector<2x8xf32>
    %148 = arith.addf %146, %147 : vector<2x8xf32>
    %149 = math.tanh %148 : vector<2x8xf32>
    %150 = arith.mulf %143, %149 : vector<2x8xf32>
    %c10 = arith.constant 10 : index
    %c0_37 = arith.constant 0 : index
    %151 = vector.load %arg16[%c10, %c0_37] : memref<16x8xf32, #tpu.memory_space<vmem>>, vector<2x8xf32>
    tpu.vector_store %arg16[%c10, %c0_37], %150 {strides = array<i32>} : memref<16x8xf32, #tpu.memory_space<vmem>>, vector<2x8xf32>,
    %152 = vector.extract_strided_slice %27 {offsets = [12, 0], sizes = [2, 32], strides = [1, 1]} : vector<16x32xf32> to vector<2x32xf32>
    %cst_38 = arith.constant dense<0.000000e+00> : vector<2x32xf32>
    %153 = tpu.matmul %150, %28, %cst_38 {dimension_numbers = #tpu.dot_dimension_numbers<[1], [0], [0], [1], [0, 0, 1, 1], [], []>} : vector<2x8xf32>, vector<8x32xf32>, vector<2x32xf32> -> vector<2x32xf32>
    %154 = arith.addf %152, %153 : vector<2x32xf32>
    %155 = vector.extract_strided_slice %154 {offsets = [0, 0], sizes = [2, 24], strides = [1, 1]} : vector<2x32xf32> to vector<2x24xf32>
    %156 = arith.negf %155 : vector<2x24xf32>
    %157 = math.exp %156 : vector<2x24xf32>
    %cst_39 = arith.constant 1.000000e+00 : f32
    %158 = vector.broadcast %cst_39 : f32 to vector<2x24xf32>
    %159 = arith.addf %158, %157 : vector<2x24xf32>
    %160 = arith.divf %158, %159 : vector<2x24xf32>
    %161 = vector.extract_strided_slice %160 {offsets = [0, 0], sizes = [2, 8], strides = [1, 1]} : vector<2x24xf32> to vector<2x8xf32>
    %162 = vector.extract_strided_slice %160 {offsets = [0, 8], sizes = [2, 8], strides = [1, 1]} : vector<2x24xf32> to vector<2x8xf32>
    %163 = vector.extract_strided_slice %160 {offsets = [0, 16], sizes = [2, 8], strides = [1, 1]} : vector<2x24xf32> to vector<2x8xf32>
    %164 = vector.extract_strided_slice %154 {offsets = [0, 24], sizes = [2, 8], strides = [1, 1]} : vector<2x32xf32> to vector<2x8xf32>
    %165 = math.tanh %164 : vector<2x8xf32>
    %166 = arith.mulf %162, %148 : vector<2x8xf32>
    %167 = arith.mulf %161, %165 : vector<2x8xf32>
    %168 = arith.addf %166, %167 : vector<2x8xf32>
    %169 = math.tanh %168 : vector<2x8xf32>
    %170 = arith.mulf %163, %169 : vector<2x8xf32>
    %c12 = arith.constant 12 : index
    %c0_40 = arith.constant 0 : index
    %171 = vector.load %arg16[%c12, %c0_40] : memref<16x8xf32, #tpu.memory_space<vmem>>, vector<2x8xf32>
    tpu.vector_store %arg16[%c12, %c0_40], %170 {strides = array<i32>} : memref<16x8xf32, #tpu.memory_space<vmem>>, vector<2x8xf32>,
    %172 = vector.extract_strided_slice %27 {offsets = [14, 0], sizes = [2, 32], strides = [1, 1]} : vector<16x32xf32> to vector<2x32xf32>
    %cst_41 = arith.constant dense<0.000000e+00> : vector<2x32xf32>
    %173 = tpu.matmul %170, %28, %cst_41 {dimension_numbers = #tpu.dot_dimension_numbers<[1], [0], [0], [1], [0, 0, 1, 1], [], []>} : vector<2x8xf32>, vector<8x32xf32>, vector<2x32xf32> -> vector<2x32xf32>
    %174 = arith.addf %172, %173 : vector<2x32xf32>
    %175 = vector.extract_strided_slice %174 {offsets = [0, 0], sizes = [2, 24], strides = [1, 1]} : vector<2x32xf32> to vector<2x24xf32>
    %176 = arith.negf %175 : vector<2x24xf32>
    %177 = math.exp %176 : vector<2x24xf32>
    %cst_42 = arith.constant 1.000000e+00 : f32
    %178 = vector.broadcast %cst_42 : f32 to vector<2x24xf32>
    %179 = arith.addf %178, %177 : vector<2x24xf32>
    %180 = arith.divf %178, %179 : vector<2x24xf32>
    %181 = vector.extract_strided_slice %180 {offsets = [0, 0], sizes = [2, 8], strides = [1, 1]} : vector<2x24xf32> to vector<2x8xf32>
    %182 = vector.extract_strided_slice %180 {offsets = [0, 8], sizes = [2, 8], strides = [1, 1]} : vector<2x24xf32> to vector<2x8xf32>
    %183 = vector.extract_strided_slice %180 {offsets = [0, 16], sizes = [2, 8], strides = [1, 1]} : vector<2x24xf32> to vector<2x8xf32>
    %184 = vector.extract_strided_slice %174 {offsets = [0, 24], sizes = [2, 8], strides = [1, 1]} : vector<2x32xf32> to vector<2x8xf32>
    %185 = math.tanh %184 : vector<2x8xf32>
    %186 = arith.mulf %182, %168 : vector<2x8xf32>
    %187 = arith.mulf %181, %185 : vector<2x8xf32>
    %188 = arith.addf %186, %187 : vector<2x8xf32>
    %189 = math.tanh %188 : vector<2x8xf32>
    %190 = arith.mulf %183, %189 : vector<2x8xf32>
    %c14 = arith.constant 14 : index
    %c0_43 = arith.constant 0 : index
    %191 = vector.load %arg16[%c14, %c0_43] : memref<16x8xf32, #tpu.memory_space<vmem>>, vector<2x8xf32>
    tpu.vector_store %arg16[%c14, %c0_43], %190 {strides = array<i32>} : memref<16x8xf32, #tpu.memory_space<vmem>>, vector<2x8xf32>,
    %c0_44 = arith.constant 0 : index
    %c0_45 = arith.constant 0 : index
    %192 = vector.load %arg16[%c0_44, %c0_45] : memref<16x8xf32, #tpu.memory_space<vmem>>, vector<16x8xf32>
    %c0_46 = arith.constant 0 : index
    %c0_47 = arith.constant 0 : index
    %193 = vector.load %arg6[%c0_46, %c0_47] : memref<8x32xf32, #tpu.memory_space<vmem>>, vector<8x32xf32>
    %cst_48 = arith.constant dense<0.000000e+00> : vector<16x32xf32>
    %194 = tpu.matmul %192, %193, %cst_48 {dimension_numbers = #tpu.dot_dimension_numbers<[1], [0], [0], [1], [0, 0, 1, 1], [], []>} : vector<16x8xf32>, vector<8x32xf32>, vector<16x32xf32> -> vector<16x32xf32>
    %c0_49 = arith.constant 0 : index
    %c0_50 = arith.constant 0 : index
    %195 = vector.load %arg8[%c0_49, %c0_50] : memref<1x32xf32, #tpu.memory_space<vmem>>, vector<1x32xf32>
    %196 = vector.broadcast %195 : vector<1x32xf32> to vector<16x32xf32>
    %197 = arith.addf %194, %196 : vector<16x32xf32>
    %cst_51 = arith.constant 0.000000e+00 : f32
    %198 = vector.broadcast %cst_51 : f32 to vector<2x8xf32>
    %cst_52 = arith.constant 0.000000e+00 : f32
    %199 = vector.broadcast %cst_52 : f32 to vector<2x8xf32>
    %200 = vector.extract_strided_slice %197 {offsets = [0, 0], sizes = [2, 32], strides = [1, 1]} : vector<16x32xf32> to vector<2x32xf32>
    %cst_53 = arith.constant dense<0.000000e+00> : vector<2x32xf32>
    %201 = tpu.matmul %198, %29, %cst_53 {dimension_numbers = #tpu.dot_dimension_numbers<[1], [0], [0], [1], [0, 0, 1, 1], [], []>} : vector<2x8xf32>, vector<8x32xf32>, vector<2x32xf32> -> vector<2x32xf32>
    %202 = arith.addf %200, %201 : vector<2x32xf32>
    %203 = vector.extract_strided_slice %202 {offsets = [0, 0], sizes = [2, 24], strides = [1, 1]} : vector<2x32xf32> to vector<2x24xf32>
    %204 = arith.negf %203 : vector<2x24xf32>
    %205 = math.exp %204 : vector<2x24xf32>
    %cst_54 = arith.constant 1.000000e+00 : f32
    %206 = vector.broadcast %cst_54 : f32 to vector<2x24xf32>
    %207 = arith.addf %206, %205 : vector<2x24xf32>
    %208 = arith.divf %206, %207 : vector<2x24xf32>
    %209 = vector.extract_strided_slice %208 {offsets = [0, 0], sizes = [2, 8], strides = [1, 1]} : vector<2x24xf32> to vector<2x8xf32>
    %210 = vector.extract_strided_slice %208 {offsets = [0, 8], sizes = [2, 8], strides = [1, 1]} : vector<2x24xf32> to vector<2x8xf32>
    %211 = vector.extract_strided_slice %208 {offsets = [0, 16], sizes = [2, 8], strides = [1, 1]} : vector<2x24xf32> to vector<2x8xf32>
    %212 = vector.extract_strided_slice %202 {offsets = [0, 24], sizes = [2, 8], strides = [1, 1]} : vector<2x32xf32> to vector<2x8xf32>
    %213 = math.tanh %212 : vector<2x8xf32>
    %214 = arith.mulf %210, %199 : vector<2x8xf32>
    %215 = arith.mulf %209, %213 : vector<2x8xf32>
    %216 = arith.addf %214, %215 : vector<2x8xf32>
    %217 = math.tanh %216 : vector<2x8xf32>
    %218 = arith.mulf %211, %217 : vector<2x8xf32>
    %c0_55 = arith.constant 0 : index
    %c0_56 = arith.constant 0 : index
    %219 = vector.load %arg17[%c0_55, %c0_56] : memref<16x8xf32, #tpu.memory_space<vmem>>, vector<2x8xf32>
    tpu.vector_store %arg17[%c0_55, %c0_56], %218 {strides = array<i32>} : memref<16x8xf32, #tpu.memory_space<vmem>>, vector<2x8xf32>,
    %220 = vector.extract_strided_slice %197 {offsets = [2, 0], sizes = [2, 32], strides = [1, 1]} : vector<16x32xf32> to vector<2x32xf32>
    %cst_57 = arith.constant dense<0.000000e+00> : vector<2x32xf32>
    %221 = tpu.matmul %218, %29, %cst_57 {dimension_numbers = #tpu.dot_dimension_numbers<[1], [0], [0], [1], [0, 0, 1, 1], [], []>} : vector<2x8xf32>, vector<8x32xf32>, vector<2x32xf32> -> vector<2x32xf32>
    %222 = arith.addf %220, %221 : vector<2x32xf32>
    %223 = vector.extract_strided_slice %222 {offsets = [0, 0], sizes = [2, 24], strides = [1, 1]} : vector<2x32xf32> to vector<2x24xf32>
    %224 = arith.negf %223 : vector<2x24xf32>
    %225 = math.exp %224 : vector<2x24xf32>
    %cst_58 = arith.constant 1.000000e+00 : f32
    %226 = vector.broadcast %cst_58 : f32 to vector<2x24xf32>
    %227 = arith.addf %226, %225 : vector<2x24xf32>
    %228 = arith.divf %226, %227 : vector<2x24xf32>
    %229 = vector.extract_strided_slice %228 {offsets = [0, 0], sizes = [2, 8], strides = [1, 1]} : vector<2x24xf32> to vector<2x8xf32>
    %230 = vector.extract_strided_slice %228 {offsets = [0, 8], sizes = [2, 8], strides = [1, 1]} : vector<2x24xf32> to vector<2x8xf32>
    %231 = vector.extract_strided_slice %228 {offsets = [0, 16], sizes = [2, 8], strides = [1, 1]} : vector<2x24xf32> to vector<2x8xf32>
    %232 = vector.extract_strided_slice %222 {offsets = [0, 24], sizes = [2, 8], strides = [1, 1]} : vector<2x32xf32> to vector<2x8xf32>
    %233 = math.tanh %232 : vector<2x8xf32>
    %234 = arith.mulf %230, %216 : vector<2x8xf32>
    %235 = arith.mulf %229, %233 : vector<2x8xf32>
    %236 = arith.addf %234, %235 : vector<2x8xf32>
    %237 = math.tanh %236 : vector<2x8xf32>
    %238 = arith.mulf %231, %237 : vector<2x8xf32>
    %c2_59 = arith.constant 2 : index
    %c0_60 = arith.constant 0 : index
    %239 = vector.load %arg17[%c2_59, %c0_60] : memref<16x8xf32, #tpu.memory_space<vmem>>, vector<2x8xf32>
    tpu.vector_store %arg17[%c2_59, %c0_60], %238 {strides = array<i32>} : memref<16x8xf32, #tpu.memory_space<vmem>>, vector<2x8xf32>,
    %240 = vector.extract_strided_slice %197 {offsets = [4, 0], sizes = [2, 32], strides = [1, 1]} : vector<16x32xf32> to vector<2x32xf32>
    %cst_61 = arith.constant dense<0.000000e+00> : vector<2x32xf32>
    %241 = tpu.matmul %238, %29, %cst_61 {dimension_numbers = #tpu.dot_dimension_numbers<[1], [0], [0], [1], [0, 0, 1, 1], [], []>} : vector<2x8xf32>, vector<8x32xf32>, vector<2x32xf32> -> vector<2x32xf32>
    %242 = arith.addf %240, %241 : vector<2x32xf32>
    %243 = vector.extract_strided_slice %242 {offsets = [0, 0], sizes = [2, 24], strides = [1, 1]} : vector<2x32xf32> to vector<2x24xf32>
    %244 = arith.negf %243 : vector<2x24xf32>
    %245 = math.exp %244 : vector<2x24xf32>
    %cst_62 = arith.constant 1.000000e+00 : f32
    %246 = vector.broadcast %cst_62 : f32 to vector<2x24xf32>
    %247 = arith.addf %246, %245 : vector<2x24xf32>
    %248 = arith.divf %246, %247 : vector<2x24xf32>
    %249 = vector.extract_strided_slice %248 {offsets = [0, 0], sizes = [2, 8], strides = [1, 1]} : vector<2x24xf32> to vector<2x8xf32>
    %250 = vector.extract_strided_slice %248 {offsets = [0, 8], sizes = [2, 8], strides = [1, 1]} : vector<2x24xf32> to vector<2x8xf32>
    %251 = vector.extract_strided_slice %248 {offsets = [0, 16], sizes = [2, 8], strides = [1, 1]} : vector<2x24xf32> to vector<2x8xf32>
    %252 = vector.extract_strided_slice %242 {offsets = [0, 24], sizes = [2, 8], strides = [1, 1]} : vector<2x32xf32> to vector<2x8xf32>
    %253 = math.tanh %252 : vector<2x8xf32>
    %254 = arith.mulf %250, %236 : vector<2x8xf32>
    %255 = arith.mulf %249, %253 : vector<2x8xf32>
    %256 = arith.addf %254, %255 : vector<2x8xf32>
    %257 = math.tanh %256 : vector<2x8xf32>
    %258 = arith.mulf %251, %257 : vector<2x8xf32>
    %c4_63 = arith.constant 4 : index
    %c0_64 = arith.constant 0 : index
    %259 = vector.load %arg17[%c4_63, %c0_64] : memref<16x8xf32, #tpu.memory_space<vmem>>, vector<2x8xf32>
    tpu.vector_store %arg17[%c4_63, %c0_64], %258 {strides = array<i32>} : memref<16x8xf32, #tpu.memory_space<vmem>>, vector<2x8xf32>,
    %260 = vector.extract_strided_slice %197 {offsets = [6, 0], sizes = [2, 32], strides = [1, 1]} : vector<16x32xf32> to vector<2x32xf32>
    %cst_65 = arith.constant dense<0.000000e+00> : vector<2x32xf32>
    %261 = tpu.matmul %258, %29, %cst_65 {dimension_numbers = #tpu.dot_dimension_numbers<[1], [0], [0], [1], [0, 0, 1, 1], [], []>} : vector<2x8xf32>, vector<8x32xf32>, vector<2x32xf32> -> vector<2x32xf32>
    %262 = arith.addf %260, %261 : vector<2x32xf32>
    %263 = vector.extract_strided_slice %262 {offsets = [0, 0], sizes = [2, 24], strides = [1, 1]} : vector<2x32xf32> to vector<2x24xf32>
    %264 = arith.negf %263 : vector<2x24xf32>
    %265 = math.exp %264 : vector<2x24xf32>
    %cst_66 = arith.constant 1.000000e+00 : f32
    %266 = vector.broadcast %cst_66 : f32 to vector<2x24xf32>
    %267 = arith.addf %266, %265 : vector<2x24xf32>
    %268 = arith.divf %266, %267 : vector<2x24xf32>
    %269 = vector.extract_strided_slice %268 {offsets = [0, 0], sizes = [2, 8], strides = [1, 1]} : vector<2x24xf32> to vector<2x8xf32>
    %270 = vector.extract_strided_slice %268 {offsets = [0, 8], sizes = [2, 8], strides = [1, 1]} : vector<2x24xf32> to vector<2x8xf32>
    %271 = vector.extract_strided_slice %268 {offsets = [0, 16], sizes = [2, 8], strides = [1, 1]} : vector<2x24xf32> to vector<2x8xf32>
    %272 = vector.extract_strided_slice %262 {offsets = [0, 24], sizes = [2, 8], strides = [1, 1]} : vector<2x32xf32> to vector<2x8xf32>
    %273 = math.tanh %272 : vector<2x8xf32>
    %274 = arith.mulf %270, %256 : vector<2x8xf32>
    %275 = arith.mulf %269, %273 : vector<2x8xf32>
    %276 = arith.addf %274, %275 : vector<2x8xf32>
    %277 = math.tanh %276 : vector<2x8xf32>
    %278 = arith.mulf %271, %277 : vector<2x8xf32>
    %c6_67 = arith.constant 6 : index
    %c0_68 = arith.constant 0 : index
    %279 = vector.load %arg17[%c6_67, %c0_68] : memref<16x8xf32, #tpu.memory_space<vmem>>, vector<2x8xf32>
    tpu.vector_store %arg17[%c6_67, %c0_68], %278 {strides = array<i32>} : memref<16x8xf32, #tpu.memory_space<vmem>>, vector<2x8xf32>,
    %280 = vector.extract_strided_slice %197 {offsets = [8, 0], sizes = [2, 32], strides = [1, 1]} : vector<16x32xf32> to vector<2x32xf32>
    %cst_69 = arith.constant dense<0.000000e+00> : vector<2x32xf32>
    %281 = tpu.matmul %278, %29, %cst_69 {dimension_numbers = #tpu.dot_dimension_numbers<[1], [0], [0], [1], [0, 0, 1, 1], [], []>} : vector<2x8xf32>, vector<8x32xf32>, vector<2x32xf32> -> vector<2x32xf32>
    %282 = arith.addf %280, %281 : vector<2x32xf32>
    %283 = vector.extract_strided_slice %282 {offsets = [0, 0], sizes = [2, 24], strides = [1, 1]} : vector<2x32xf32> to vector<2x24xf32>
    %284 = arith.negf %283 : vector<2x24xf32>
    %285 = math.exp %284 : vector<2x24xf32>
    %cst_70 = arith.constant 1.000000e+00 : f32
    %286 = vector.broadcast %cst_70 : f32 to vector<2x24xf32>
    %287 = arith.addf %286, %285 : vector<2x24xf32>
    %288 = arith.divf %286, %287 : vector<2x24xf32>
    %289 = vector.extract_strided_slice %288 {offsets = [0, 0], sizes = [2, 8], strides = [1, 1]} : vector<2x24xf32> to vector<2x8xf32>
    %290 = vector.extract_strided_slice %288 {offsets = [0, 8], sizes = [2, 8], strides = [1, 1]} : vector<2x24xf32> to vector<2x8xf32>
    %291 = vector.extract_strided_slice %288 {offsets = [0, 16], sizes = [2, 8], strides = [1, 1]} : vector<2x24xf32> to vector<2x8xf32>
    %292 = vector.extract_strided_slice %282 {offsets = [0, 24], sizes = [2, 8], strides = [1, 1]} : vector<2x32xf32> to vector<2x8xf32>
    %293 = math.tanh %292 : vector<2x8xf32>
    %294 = arith.mulf %290, %276 : vector<2x8xf32>
    %295 = arith.mulf %289, %293 : vector<2x8xf32>
    %296 = arith.addf %294, %295 : vector<2x8xf32>
    %297 = math.tanh %296 : vector<2x8xf32>
    %298 = arith.mulf %291, %297 : vector<2x8xf32>
    %c8_71 = arith.constant 8 : index
    %c0_72 = arith.constant 0 : index
    %299 = vector.load %arg17[%c8_71, %c0_72] : memref<16x8xf32, #tpu.memory_space<vmem>>, vector<2x8xf32>
    tpu.vector_store %arg17[%c8_71, %c0_72], %298 {strides = array<i32>} : memref<16x8xf32, #tpu.memory_space<vmem>>, vector<2x8xf32>,
    %300 = vector.extract_strided_slice %197 {offsets = [10, 0], sizes = [2, 32], strides = [1, 1]} : vector<16x32xf32> to vector<2x32xf32>
    %cst_73 = arith.constant dense<0.000000e+00> : vector<2x32xf32>
    %301 = tpu.matmul %298, %29, %cst_73 {dimension_numbers = #tpu.dot_dimension_numbers<[1], [0], [0], [1], [0, 0, 1, 1], [], []>} : vector<2x8xf32>, vector<8x32xf32>, vector<2x32xf32> -> vector<2x32xf32>
    %302 = arith.addf %300, %301 : vector<2x32xf32>
    %303 = vector.extract_strided_slice %302 {offsets = [0, 0], sizes = [2, 24], strides = [1, 1]} : vector<2x32xf32> to vector<2x24xf32>
    %304 = arith.negf %303 : vector<2x24xf32>
    %305 = math.exp %304 : vector<2x24xf32>
    %cst_74 = arith.constant 1.000000e+00 : f32
    %306 = vector.broadcast %cst_74 : f32 to vector<2x24xf32>
    %307 = arith.addf %306, %305 : vector<2x24xf32>
    %308 = arith.divf %306, %307 : vector<2x24xf32>
    %309 = vector.extract_strided_slice %308 {offsets = [0, 0], sizes = [2, 8], strides = [1, 1]} : vector<2x24xf32> to vector<2x8xf32>
    %310 = vector.extract_strided_slice %308 {offsets = [0, 8], sizes = [2, 8], strides = [1, 1]} : vector<2x24xf32> to vector<2x8xf32>
    %311 = vector.extract_strided_slice %308 {offsets = [0, 16], sizes = [2, 8], strides = [1, 1]} : vector<2x24xf32> to vector<2x8xf32>
    %312 = vector.extract_strided_slice %302 {offsets = [0, 24], sizes = [2, 8], strides = [1, 1]} : vector<2x32xf32> to vector<2x8xf32>
    %313 = math.tanh %312 : vector<2x8xf32>
    %314 = arith.mulf %310, %296 : vector<2x8xf32>
    %315 = arith.mulf %309, %313 : vector<2x8xf32>
    %316 = arith.addf %314, %315 : vector<2x8xf32>
    %317 = math.tanh %316 : vector<2x8xf32>
    %318 = arith.mulf %311, %317 : vector<2x8xf32>
    %c10_75 = arith.constant 10 : index
    %c0_76 = arith.constant 0 : index
    %319 = vector.load %arg17[%c10_75, %c0_76] : memref<16x8xf32, #tpu.memory_space<vmem>>, vector<2x8xf32>
    tpu.vector_store %arg17[%c10_75, %c0_76], %318 {strides = array<i32>} : memref<16x8xf32, #tpu.memory_space<vmem>>, vector<2x8xf32>,
    %320 = vector.extract_strided_slice %197 {offsets = [12, 0], sizes = [2, 32], strides = [1, 1]} : vector<16x32xf32> to vector<2x32xf32>
    %cst_77 = arith.constant dense<0.000000e+00> : vector<2x32xf32>
    %321 = tpu.matmul %318, %29, %cst_77 {dimension_numbers = #tpu.dot_dimension_numbers<[1], [0], [0], [1], [0, 0, 1, 1], [], []>} : vector<2x8xf32>, vector<8x32xf32>, vector<2x32xf32> -> vector<2x32xf32>
    %322 = arith.addf %320, %321 : vector<2x32xf32>
    %323 = vector.extract_strided_slice %322 {offsets = [0, 0], sizes = [2, 24], strides = [1, 1]} : vector<2x32xf32> to vector<2x24xf32>
    %324 = arith.negf %323 : vector<2x24xf32>
    %325 = math.exp %324 : vector<2x24xf32>
    %cst_78 = arith.constant 1.000000e+00 : f32
    %326 = vector.broadcast %cst_78 : f32 to vector<2x24xf32>
    %327 = arith.addf %326, %325 : vector<2x24xf32>
    %328 = arith.divf %326, %327 : vector<2x24xf32>
    %329 = vector.extract_strided_slice %328 {offsets = [0, 0], sizes = [2, 8], strides = [1, 1]} : vector<2x24xf32> to vector<2x8xf32>
    %330 = vector.extract_strided_slice %328 {offsets = [0, 8], sizes = [2, 8], strides = [1, 1]} : vector<2x24xf32> to vector<2x8xf32>
    %331 = vector.extract_strided_slice %328 {offsets = [0, 16], sizes = [2, 8], strides = [1, 1]} : vector<2x24xf32> to vector<2x8xf32>
    %332 = vector.extract_strided_slice %322 {offsets = [0, 24], sizes = [2, 8], strides = [1, 1]} : vector<2x32xf32> to vector<2x8xf32>
    %333 = math.tanh %332 : vector<2x8xf32>
    %334 = arith.mulf %330, %316 : vector<2x8xf32>
    %335 = arith.mulf %329, %333 : vector<2x8xf32>
    %336 = arith.addf %334, %335 : vector<2x8xf32>
    %337 = math.tanh %336 : vector<2x8xf32>
    %338 = arith.mulf %331, %337 : vector<2x8xf32>
    %c12_79 = arith.constant 12 : index
    %c0_80 = arith.constant 0 : index
    %339 = vector.load %arg17[%c12_79, %c0_80] : memref<16x8xf32, #tpu.memory_space<vmem>>, vector<2x8xf32>
    tpu.vector_store %arg17[%c12_79, %c0_80], %338 {strides = array<i32>} : memref<16x8xf32, #tpu.memory_space<vmem>>, vector<2x8xf32>,
    %340 = vector.extract_strided_slice %197 {offsets = [14, 0], sizes = [2, 32], strides = [1, 1]} : vector<16x32xf32> to vector<2x32xf32>
    %cst_81 = arith.constant dense<0.000000e+00> : vector<2x32xf32>
    %341 = tpu.matmul %338, %29, %cst_81 {dimension_numbers = #tpu.dot_dimension_numbers<[1], [0], [0], [1], [0, 0, 1, 1], [], []>} : vector<2x8xf32>, vector<8x32xf32>, vector<2x32xf32> -> vector<2x32xf32>
    %342 = arith.addf %340, %341 : vector<2x32xf32>
    %343 = vector.extract_strided_slice %342 {offsets = [0, 0], sizes = [2, 24], strides = [1, 1]} : vector<2x32xf32> to vector<2x24xf32>
    %344 = arith.negf %343 : vector<2x24xf32>
    %345 = math.exp %344 : vector<2x24xf32>
    %cst_82 = arith.constant 1.000000e+00 : f32
    %346 = vector.broadcast %cst_82 : f32 to vector<2x24xf32>
    %347 = arith.addf %346, %345 : vector<2x24xf32>
    %348 = arith.divf %346, %347 : vector<2x24xf32>
    %349 = vector.extract_strided_slice %348 {offsets = [0, 0], sizes = [2, 8], strides = [1, 1]} : vector<2x24xf32> to vector<2x8xf32>
    %350 = vector.extract_strided_slice %348 {offsets = [0, 8], sizes = [2, 8], strides = [1, 1]} : vector<2x24xf32> to vector<2x8xf32>
    %351 = vector.extract_strided_slice %348 {offsets = [0, 16], sizes = [2, 8], strides = [1, 1]} : vector<2x24xf32> to vector<2x8xf32>
    %352 = vector.extract_strided_slice %342 {offsets = [0, 24], sizes = [2, 8], strides = [1, 1]} : vector<2x32xf32> to vector<2x8xf32>
    %353 = math.tanh %352 : vector<2x8xf32>
    %354 = arith.mulf %350, %336 : vector<2x8xf32>
    %355 = arith.mulf %349, %353 : vector<2x8xf32>
    %356 = arith.addf %354, %355 : vector<2x8xf32>
    %357 = math.tanh %356 : vector<2x8xf32>
    %358 = arith.mulf %351, %357 : vector<2x8xf32>
    %c14_83 = arith.constant 14 : index
    %c0_84 = arith.constant 0 : index
    %359 = vector.load %arg17[%c14_83, %c0_84] : memref<16x8xf32, #tpu.memory_space<vmem>>, vector<2x8xf32>
    tpu.vector_store %arg17[%c14_83, %c0_84], %358 {strides = array<i32>} : memref<16x8xf32, #tpu.memory_space<vmem>>, vector<2x8xf32>,
    %360 = tpu.iota {dimensions = array<i32: 0>} : vector<8x16xi32>
    %361 = tpu.iota {dimensions = array<i32: 1>} : vector<8x16xi32>
    %c2_i32 = arith.constant 2 : i32
    %362 = vector.broadcast %c2_i32 : i32 to vector<8x16xi32>
    %363 = arith.muli %360, %362 : vector<8x16xi32>
    %364 = arith.cmpi sge, %361, %363 : vector<8x16xi32>
    %c1_i32 = arith.constant 1 : i32
    %365 = vector.broadcast %c1_i32 : i32 to vector<8x16xi32>
    %366 = arith.addi %360, %365 : vector<8x16xi32>
    %c2_i32_85 = arith.constant 2 : i32
    %367 = vector.broadcast %c2_i32_85 : i32 to vector<8x16xi32>
    %368 = arith.muli %366, %367 : vector<8x16xi32>
    %369 = arith.cmpi slt, %361, %368 : vector<8x16xi32>
    %370 = arith.andi %364, %369 : vector<8x16xi1>
    %cst_86 = arith.constant 5.000000e-01 : f32
    %cst_87 = arith.constant 0.000000e+00 : f32
    %371 = vector.broadcast %cst_86 : f32 to vector<8x16xf32>
    %372 = vector.broadcast %cst_87 : f32 to vector<8x16xf32>
    %373 = arith.select %370, %371, %372 : vector<8x16xi1>, vector<8x16xf32>
    %c0_88 = arith.constant 0 : index
    %c0_89 = arith.constant 0 : index
    %374 = vector.load %arg17[%c0_88, %c0_89] : memref<16x8xf32, #tpu.memory_space<vmem>>, vector<16x8xf32>
    %cst_90 = arith.constant dense<0.000000e+00> : vector<8x8xf32>
    %375 = tpu.matmul %373, %374, %cst_90 {dimension_numbers = #tpu.dot_dimension_numbers<[1], [0], [0], [1], [0, 0, 1, 1], [], []>} : vector<8x16xf32>, vector<16x8xf32>, vector<8x8xf32> -> vector<8x8xf32>
    %c0_91 = arith.constant 0 : index
    %c0_92 = arith.constant 0 : index
    %376 = vector.load %arg9[%c0_91, %c0_92] : memref<8x32xf32, #tpu.memory_space<vmem>>, vector<8x32xf32>
    %cst_93 = arith.constant dense<0.000000e+00> : vector<8x32xf32>
    %377 = tpu.matmul %375, %376, %cst_93 {dimension_numbers = #tpu.dot_dimension_numbers<[1], [0], [0], [1], [0, 0, 1, 1], [], []>} : vector<8x8xf32>, vector<8x32xf32>, vector<8x32xf32> -> vector<8x32xf32>
    %c0_94 = arith.constant 0 : index
    %c0_95 = arith.constant 0 : index
    %378 = vector.load %arg10[%c0_94, %c0_95] : memref<1x32xf32, #tpu.memory_space<vmem>>, vector<1x32xf32>
    %379 = vector.broadcast %378 : vector<1x32xf32> to vector<8x32xf32>
    %380 = arith.addf %377, %379 : vector<8x32xf32>
    %c0_96 = arith.constant 0 : index
    %c0_97 = arith.constant 0 : index
    %381 = vector.load %arg11[%c0_96, %c0_97] : memref<32x128xf32, #tpu.memory_space<vmem>>, vector<32x128xf32>
    %cst_98 = arith.constant dense<0.000000e+00> : vector<8x128xf32>
    %382 = tpu.matmul %380, %381, %cst_98 {dimension_numbers = #tpu.dot_dimension_numbers<[1], [0], [0], [1], [0, 0, 1, 1], [], []>} : vector<8x32xf32>, vector<32x128xf32>, vector<8x128xf32> -> vector<8x128xf32>
    %c0_99 = arith.constant 0 : index
    %c0_100 = arith.constant 0 : index
    %383 = vector.load %arg12[%c0_99, %c0_100] : memref<1x128xf32, #tpu.memory_space<vmem>>, vector<1x128xf32>
    %384 = vector.broadcast %383 : vector<1x128xf32> to vector<8x128xf32>
    %385 = arith.addf %382, %384 : vector<8x128xf32>
    %c0_101 = arith.constant 0 : index
    %c0_102 = arith.constant 0 : index
    %386 = vector.load %arg13[%c0_101, %c0_102] : memref<8x128xf32, #tpu.memory_space<vmem>>, vector<8x128xf32>
    tpu.vector_store %arg13[%c0_101, %c0_102], %385 {strides = array<i32>} : memref<8x128xf32, #tpu.memory_space<vmem>>, vector<8x128xf32>,
    %c0_103 = arith.constant 0 : index
    %c0_104 = arith.constant 0 : index
    %387 = vector.load %arg14[%c0_103, %c0_104] : memref<2x8xf32, #tpu.memory_space<vmem>>, vector<2x8xf32>
    tpu.vector_store %arg14[%c0_103, %c0_104], %358 {strides = array<i32>} : memref<2x8xf32, #tpu.memory_space<vmem>>, vector<2x8xf32>,
    %c0_105 = arith.constant 0 : index
    %c0_106 = arith.constant 0 : index
    %388 = vector.load %arg15[%c0_105, %c0_106] : memref<2x8xf32, #tpu.memory_space<vmem>>, vector<2x8xf32>
    tpu.vector_store %arg15[%c0_105, %c0_106], %356 {strides = array<i32>} : memref<2x8xf32, #tpu.memory_space<vmem>>, vector<2x8xf32>,
    return
  }
}

</mosaic_0001>

<llo_original>
// kernel: tpu_custom_call.1
$region0: #{tpu_custom_call.1}
  #allocation0 [shape = 'u32[]', space=smem, size = 0x4, offset = 0x4, fixed_abs, tag = 'smem constant byte address 0x4 - core index']
  #allocation1 [shape = 'u32[72,128]{1,0:T(1,128)}', space=vmem, size = 0x9000, scoped, tag = 'internal scratch']
  #allocation2 [shape = 'f32[16,8]{1,0:T(8,128)}', space=vmem, size = 0x2000, scoped, tag = 'scratch operand']
  #allocation3 [shape = 'f32[16,8]{1,0:T(8,128)}', space=vmem, size = 0x2000, scoped, tag = 'scratch operand']
  #allocation4 [shape = 'f32[1,1]{1,0:T(1,128)S(1)}', space=vmem, size = 0x200, scoped, tag = 'scoped memory for tpu_custom_call.1']
  %s0 = inlined_call_operand.vmem [shape: s32[16,1], index: 0, kind: input, shape index: {}]
  %s1 = inlined_call_operand.<no memory space> [shape: f32[1,1], index: 1, kind: input, shape index: {}]
  %s2 = inlined_call_operand.vmem [shape: f32[16,2], index: 2, kind: input, shape index: {}]
  %s3 = inlined_call_operand.vmem [shape: f32[2,32], index: 3, kind: input, shape index: {}]
  %s4 = inlined_call_operand.vmem [shape: f32[8,32], index: 4, kind: input, shape index: {}]
  %s5 = inlined_call_operand.vmem [shape: f32[1,32], index: 5, kind: input, shape index: {}]
  %s6 = inlined_call_operand.hbm [shape: f32[8,32], index: 6, kind: input, shape index: {}]
  %s7 = inlined_call_operand.hbm [shape: f32[8,32], index: 7, kind: input, shape index: {}]
  %s8 = inlined_call_operand.vmem [shape: f32[1,32], index: 8, kind: input, shape index: {}]
  %s9 = inlined_call_operand.hbm [shape: f32[8,32], index: 9, kind: input, shape index: {}]
  %s10 = inlined_call_operand.vmem [shape: f32[1,32], index: 10, kind: input, shape index: {}]
  %s11 = inlined_call_operand.vmem [shape: f32[32,128], index: 11, kind: input, shape index: {}]
  %s12 = inlined_call_operand.vmem [shape: f32[1,128], index: 12, kind: input, shape index: {}]
  %s13 = inlined_call_operand.hbm [shape: f32[8,128], index: 13, kind: output, shape index: {0}]
  %s14 = inlined_call_operand.hbm [shape: f32[2,8], index: 14, kind: output, shape index: {1}]
  %s15 = inlined_call_operand.hbm [shape: f32[2,8], index: 15, kind: output, shape index: {2}]
  %16 = xla_tuple %s13, %s14, %s15
  %s17 = sld [smem:[#allocation0]]
  $region90: #{tpu_custom_call.1} parent=0
    _
  %s19 = ssub.s32 1, %s17
  %s20 = scalar_select 0, %s19, %s17
  %v21 = vstv %s1
  %22 = vst [vmem:[#allocation4] sm:$0x1] %v21
  $region1: #{tpu_custom_call.1} parent=0
    #allocation5 [shape = 'u8[4096]{0}', space=vmem, size = 0x1000, scoped, tag = 'input window, operand 6, single buffered']
    #allocation6 [shape = 's32[1]{0}', space=sflag, size = 0x4, scoped, tag = 'scoped memory for tpu_custom_call.1']
    #allocation7 [shape = 's32[1]{0}', space=sflag, size = 0x4, scoped, tag = 'scoped memory for tpu_custom_call.1']
    #allocation8 [shape = 'u8[4096]{0}', space=vmem, size = 0x1000, scoped, tag = 'input window, operand 7, single buffered']
    #allocation9 [shape = 's32[1]{0}', space=sflag, size = 0x4, scoped, tag = 'scoped memory for tpu_custom_call.1']
    #allocation10 [shape = 'u8[4096]{0}', space=vmem, size = 0x1000, scoped, tag = 'input window, operand 9, single buffered']
    #allocation11 [shape = 'u8[4096]{0}', space=vmem, size = 0x1000, scoped, tag = 'output window, operand 0, single buffered']
    #allocation12 [shape = 'u8[1024]{0}', space=vmem, size = 0x400, scoped, tag = 'output window, operand 1, single buffered']
    #allocation13 [shape = 's32[1]{0}', space=sflag, size = 0x4, scoped, tag = 'scoped memory for tpu_custom_call.1']
    #allocation14 [shape = 'u8[1024]{0}', space=vmem, size = 0x400, scoped, tag = 'output window, operand 2, single buffered']
    %23 = vsyncpa [#allocation6], 0
    %24 = vsyncpa [#allocation9], 0
    %25 = vsyncpa [#allocation7], 0
    %26 = vsyncpa [#allocation13], 0
    // Predicated region
    $region2: #{tpu_custom_call.1} parent=1 // pred_check
      _
    $region3: #{tpu_custom_call.1} parent=1 // pred_check_branch
      %28 = sbr.rel (0) target = $region5
    $region4: #{tpu_custom_call.1} parent=1 // pred_region
      _
    $region5: #{tpu_custom_call.1} parent=1 // pred_fallthru
      _
    // Predicated region
    $region6: #{tpu_custom_call.1} parent=1 // pred_check
      _
    $region7: #{tpu_custom_call.1} parent=1 // pred_check_branch
      %30 = sbr.rel (0) target = $region9
    $region8: #{tpu_custom_call.1} parent=1 // pred_region
      _
    $region9: #{tpu_custom_call.1} parent=1 // pred_fallthru
      _
    // Predicated region
    $region10: #{tpu_custom_call.1} parent=1 // pred_check
      _
    $region11: #{tpu_custom_call.1} parent=1 // pred_check_branch
      %32 = sbr.rel (0) target = $region13
    $region12: #{tpu_custom_call.1} parent=1 // pred_region
      _
    $region13: #{tpu_custom_call.1} parent=1 // pred_fallthru
      _
    // Predicated region
    $region14: #{tpu_custom_call.1} parent=1 // pred_check
      _
    $region15: #{tpu_custom_call.1} parent=1 // pred_check_branch
      %34 = sbr.rel (0) target = $region17
    $region16: #{tpu_custom_call.1} parent=1 // pred_region
      _
    $region17: #{tpu_custom_call.1} parent=1 // pred_fallthru
      _
    // Predicated region
    $region18: #{tpu_custom_call.1} parent=1 // pred_check
      _
    $region19: #{tpu_custom_call.1} parent=1 // pred_check_branch
      %36 = sbr.rel (0) target = $region21
    $region20: #{tpu_custom_call.1} parent=1 // pred_region
      _
    $region21: #{tpu_custom_call.1} parent=1 // pred_fallthru
      _
    // Predicated region
    $region22: #{tpu_custom_call.1} parent=1 // pred_check
      _
    $region23: #{tpu_custom_call.1} parent=1 // pred_check_branch
      %38 = sbr.rel (0) target = $region25
    $region24: #{tpu_custom_call.1} parent=1 // pred_region
      _
    $region25: #{tpu_custom_call.1} parent=1 // pred_fallthru
      _
    // Predicated region
    $region26: #{tpu_custom_call.1} parent=1 // pred_check
      _
    $region27: #{tpu_custom_call.1} parent=1 // pred_check_branch
      %40 = sbr.rel (0) target = $region29
    $region28: #{tpu_custom_call.1} parent=1 // pred_region
      %42 = vsyncadd [#allocation6], 0
      %s44 = sshll.u32 %s6, 4
      %s45 = int_to_ptr.hbm [resolvable:$true] %s44
      %s46 = sshll.u32 [#allocation5], 4
      %s47 = int_to_ptr.vmem [resolvable:$true] %s46
      %49 = dma.hbm_to_vmem [thread:$0]  %s45, 128, %s47, [#allocation6]
    $region29: #{tpu_custom_call.1} parent=1 // pred_fallthru
      _
    // Predicated region
    $region30: #{tpu_custom_call.1} parent=1 // pred_check
      _
    $region31: #{tpu_custom_call.1} parent=1 // pred_check_branch
      %51 = sbr.rel (0) target = $region33
    $region32: #{tpu_custom_call.1} parent=1 // pred_region
      %53 = vsyncadd [#allocation9], 0
      %s55 = sshll.u32 %s7, 4
      %s56 = int_to_ptr.hbm [resolvable:$true] %s55
      %s57 = sshll.u32 [#allocation8], 4
      %s58 = int_to_ptr.vmem [resolvable:$true] %s57
      %60 = dma.hbm_to_vmem [thread:$0]  %s56, 128, %s58, [#allocation9]
    $region33: #{tpu_custom_call.1} parent=1 // pred_fallthru
      _
    // Predicated region
    $region34: #{tpu_custom_call.1} parent=1 // pred_check
      _
    $region35: #{tpu_custom_call.1} parent=1 // pred_check_branch
      %62 = sbr.rel (0) target = $region37
    $region36: #{tpu_custom_call.1} parent=1 // pred_region
      _
    $region37: #{tpu_custom_call.1} parent=1 // pred_fallthru
      _
    // Predicated region
    $region38: #{tpu_custom_call.1} parent=1 // pred_check
      _
    $region39: #{tpu_custom_call.1} parent=1 // pred_check_branch
      %64 = sbr.rel (0) target = $region41
    $region40: #{tpu_custom_call.1} parent=1 // pred_region
      %66 = vsyncadd [#allocation9], 0
      %s68 = sshll.u32 %s9, 4
      %s69 = int_to_ptr.hbm [resolvable:$true] %s68
      %s70 = sshll.u32 [#allocation10], 4
      %s71 = int_to_ptr.vmem [resolvable:$true] %s70
      %73 = dma.hbm_to_vmem [thread:$0]  %s69, 128, %s71, [#allocation9]
    $region41: #{tpu_custom_call.1} parent=1 // pred_fallthru
      _
    // Predicated region
    $region42: #{tpu_custom_call.1} parent=1 // pred_check
      _
    $region43: #{tpu_custom_call.1} parent=1 // pred_check_branch
      %75 = sbr.rel (0) target = $region45
    $region44: #{tpu_custom_call.1} parent=1 // pred_region
      _
    $region45: #{tpu_custom_call.1} parent=1 // pred_fallthru
      _
    // Predicated region
    $region46: #{tpu_custom_call.1} parent=1 // pred_check
      _
    $region47: #{tpu_custom_call.1} parent=1 // pred_check_branch
      %77 = sbr.rel (0) target = $region49
    $region48: #{tpu_custom_call.1} parent=1 // pred_region
      _
    $region49: #{tpu_custom_call.1} parent=1 // pred_fallthru
      _
    // Predicated region
    $region50: #{tpu_custom_call.1} parent=1 // pred_check
      _
    $region51: #{tpu_custom_call.1} parent=1 // pred_check_branch
      %79 = sbr.rel (0) target = $region53
    $region52: #{tpu_custom_call.1} parent=1 // pred_region
      _
    $region53: #{tpu_custom_call.1} parent=1 // pred_fallthru
      _
    // Predicated region
    $region54: #{tpu_custom_call.1} parent=1 // pred_check
      _
    $region55: #{tpu_custom_call.1} parent=1 // pred_check_branch
      %81 = sbr.rel (0) target = $region57
    $region56: #{tpu_custom_call.1} parent=1 // pred_region
      %83 = dma.done [#allocation6], 128
    $region57: #{tpu_custom_call.1} parent=1 // pred_fallthru
      _
    // Predicated region
    $region58: #{tpu_custom_call.1} parent=1 // pred_check
      _
    $region59: #{tpu_custom_call.1} parent=1 // pred_check_branch
      %85 = sbr.rel (0) target = $region61
    $region60: #{tpu_custom_call.1} parent=1 // pred_region
      %87 = dma.done [#allocation9], 128
    $region61: #{tpu_custom_call.1} parent=1 // pred_fallthru
      _
    // Predicated region
    $region62: #{tpu_custom_call.1} parent=1 // pred_check
      _
    $region63: #{tpu_custom_call.1} parent=1 // pred_check_branch
      %89 = sbr.rel (0) target = $region65
    $region64: #{tpu_custom_call.1} parent=1 // pred_region
      %91 = dma.done [#allocation9], 128
    $region65: #{tpu_custom_call.1} parent=1 // pred_fallthru
      _
    %v92 = vld [vmem:[%s0] sm:$0xff]
    %v93 = vld [vmem:[%s0 + $0x8] sm:$0xff]
    %v94 = vlaneseq
    %v95 = vand.u32 %v94, 127
    %96 = vset.pattern.permute.xlu0 0
    %97 = vperm.xlu0 %96, %v92
    %v98 = vpop.permute.xlu0 %97
    %99 = vset.pattern.permute.xlu0 0
    %100 = vperm.xlu0 %99, %v93
    %v101 = vpop.permute.xlu0 %100
    %vm102 = vcmp.eq.s32.totalorder %v98, %v95
    %vm103 = vcmp.eq.s32.totalorder %v101, %v95
    %v104 = vsel %vm102, 1, 0
    %v105 = vsel %vm103, 1, 0
    %v106 = vcvt.s32.f32 %v104
    %v107 = vcvt.s32.f32 %v105
    %v108 = vld [vmem:[%s2] sm:$0xff]
    %v109 = vld [vmem:[%s2 + $0x8] sm:$0xff]
    %vm110 = vcmask 130048
    %v112 = vsel %vm110, %v106, 0
    %v115 = vsel %vm110, %v107, 0
    %117 = vmatpush.msra.mxu0 0.0
    %118 = vmatpush.msra.mxu0 0.0
    %119 = vmatpush.msra.mxu0 0.0
    %120 = vmatpush.msra.mxu0 0.0
    %121 = vmatpush.msra.mxu0 0.0
    %122 = vmatpush.msra.mxu0 0.0
    %123 = vmatpush.msra.mxu0 0.0
    %124 = vmatpush.msra.mxu0 0.0
    %125 = vmatpush.msra.mxu0 0.0
    %126 = vmatpush.msra.mxu0 0.0
    %127 = vmatpush.msra.mxu0 0.0
    %128 = vmatpush.msra.mxu0 0.0
    %129 = vmatpush.msra.mxu0 0.0
    %130 = vmatpush.msra.mxu0 0.0
    %131 = vmatpush.msra.mxu0 %v109
    %132 = vmatpush.msra.mxu0 %v108
    %133 = vmatmul.f32.gmra.mxu0 %v112
    %v134 = vpop.f32.mrf.mxu0
    %v135 = vadd.f32 0.0, %v134
    %136 = vmatmul.f32.gmra.mxu0 %v115
    %v137 = vpop.f32.mrf.mxu0
    %v138 = vadd.f32 0.0, %v137
    %139 = vdwg.mxu0
    %v140 = vmul.f32 %v135, %v135
    %v141 = vmul.f32 %v138, %v138
    %vm142 = vcmask 15360
    %v143 = vsel %vm142, %v140, 0.0
    %144 = vadd.xlane.f32.xlu0 %v143
    %v145 = vpop.xlane.xlu0 %144
    %v146 = vsel %vm142, %v141, 0.0
    %147 = vadd.xlane.f32.xlu0 %v146
    %v148 = vpop.xlane.xlu0 %147
    %v149 = vrsqrt.pop %v145
    %v150 = vmul.f32 %v149, %v145
    %v151 = vmul.f32 %v150, %v149
    %v152 = vmul.f32 0.5, %v151
    %v153 = vsub.f32 1.5, %v152
    %v154 = vmul.f32 %v149, %v153
    %v155 = vmul.f32 %v145, %v154
    %vm156 = vcmp.eq.f32.partialorder %v145, inf
    %v157 = vsel %vm156, %v145, %v155
    %vm158 = vcmp.eq.f32.partialorder %v145, 0.0
    %v159 = vand.u32 %v145, 2147483648
    %v160 = vsel %vm158, %v159, %v157
    %v161 = vrsqrt.pop %v148
    %v162 = vmul.f32 %v161, %v148
    %v163 = vmul.f32 %v162, %v161
    %v164 = vmul.f32 0.5, %v163
    %v165 = vsub.f32 1.5, %v164
    %v166 = vmul.f32 %v161, %v165
    %v167 = vmul.f32 %v148, %v166
    %vm168 = vcmp.eq.f32.partialorder %v148, inf
    %v169 = vsel %vm168, %v148, %v167
    %vm170 = vcmp.eq.f32.partialorder %v148, 0.0
    %v171 = vand.u32 %v148, 2147483648
    %v172 = vsel %vm170, %v171, %v169
    %v173 = vld [vmem:[#allocation4] sm:$0x1]
    %v175 = vperm.slane %v173, 0
    %vm177 = vcmp.gt.f32.partialorder %v160, %v175
    %vm178 = vcmp.gt.f32.partialorder %v172, %v175
    %v179 = vadd.f32 %v160, 1e-07
    %v180 = vadd.f32 %v172, 1e-07
    %v181 = vrcp.pop %v179
    %v182 = vmul.f32 %v179, %v181
    %v183 = vsub.f32 1.0, %v182
    %v184 = vmul.f32 %v181, %v183
    %v185 = vadd.f32 %v181, %v184
    %vm186 = vweird.f32 %v179
    %vm187 = vweird.f32 %v181
    %vm188 = vmor %vm186, %vm187
    %v189 = vsel %vm188, %v181, %v185
    %v190 = vand.u32 2147483647, %v179
    %vm191 = vcmp.eq.f32.partialorder %v190, 8.507059e+37
    %v192 = vand.u32 %v179, 2147483648
    %v193 = vor.u32 1.1754944e-38, %v192
    %v194 = vsel %vm191, %v193, %v189
    %v195 = vmul.f32 %v175, %v194
    %v196 = vrcp.pop %v180
    %v197 = vmul.f32 %v180, %v196
    %v198 = vsub.f32 1.0, %v197
    %v199 = vmul.f32 %v196, %v198
    %v200 = vadd.f32 %v196, %v199
    %vm201 = vweird.f32 %v180
    %vm202 = vweird.f32 %v196
    %vm203 = vmor %vm201, %vm202
    %v204 = vsel %vm203, %v196, %v200
    %v205 = vand.u32 2147483647, %v180
    %vm206 = vcmp.eq.f32.partialorder %v205, 8.507059e+37
    %v207 = vand.u32 %v180, 2147483648
    %v208 = vor.u32 1.1754944e-38, %v207
    %v209 = vsel %vm206, %v208, %v204
    %v210 = vmul.f32 %v175, %v209
    %v211 = vsel %vm177, %v195, 1.0
    %v212 = vsel %vm178, %v210, 1.0
    %214 = vset.pattern.permute.xlu0 0
    %215 = vperm.xlu0 %214, %v211
    %v216 = vpop.permute.xlu0 %215
    %219 = vset.pattern.permute.xlu0 0
    %220 = vperm.xlu0 %219, %v212
    %v221 = vpop.permute.xlu0 %220
    %v223 = vmul.f32 %v135, %v216
    %v224 = vmul.f32 %v138, %v221
    %v225 = vld [vmem:[%s3] sm:$0x3]
    %v226 = vld [vmem:[%s5] sm:$0x1]
    %v228 = vperm.slane %v226, 0
    %v231 = vsel %vm142, %v223, 0
    %v234 = vsel %vm142, %v224, 0
    %vm236 = vcmask 1041408
    %v238 = vsel %vm236, %v225, 0
    %240 = vmatpush.msra.mxu0 0.0
    %241 = vmatpush.msra.mxu0 0.0
    %242 = vmatpush.msra.mxu0 0.0
    %243 = vmatpush.msra.mxu0 0.0
    %244 = vmatpush.msra.mxu0 0.0
    %245 = vmatpush.msra.mxu0 0.0
    %246 = vmatpush.msra.mxu0 0.0
    %247 = vmatpush.msra.mxu0 0.0
    %248 = vmatpush.msra.mxu0 0.0
    %249 = vmatpush.msra.mxu0 0.0
    %250 = vmatpush.msra.mxu0 0.0
    %251 = vmatpush.msra.mxu0 0.0
    %252 = vmatpush.msra.mxu0 0.0
    %253 = vmatpush.msra.mxu0 0.0
    %254 = vmatpush.msra.mxu0 0.0
    %255 = vmatpush.msra.mxu0 %v238
    %256 = vmatmul.f32.gmra.mxu0 %v231
    %v257 = vpop.f32.mrf.mxu0
    %v258 = vadd.f32 %v228, %v257
    %259 = vmatmul.f32.gmra.mxu0 %v234
    %v260 = vpop.f32.mrf.mxu0
    %v261 = vadd.f32 %v228, %v260
    %262 = vdwg.mxu0
    %v263 = vld [vmem:[%s4] sm:$0xff]
    %v264 = vld [vmem:[#allocation8] sm:$0xff]
    %vm265 = vcmask 64512
    %v267 = vsel %vm265, 0.0, 0
    %269 = vmatpush.msra.mxu0 0.0
    %270 = vmatpush.msra.mxu0 0.0
    %271 = vmatpush.msra.mxu0 0.0
    %272 = vmatpush.msra.mxu0 0.0
    %273 = vmatpush.msra.mxu0 0.0
    %274 = vmatpush.msra.mxu0 0.0
    %275 = vmatpush.msra.mxu0 0.0
    %276 = vmatpush.msra.mxu0 0.0
    %277 = vmatpush.msra.mxu0 0.0
    %278 = vmatpush.msra.mxu0 0.0
    %279 = vmatpush.msra.mxu0 0.0
    %280 = vmatpush.msra.mxu0 0.0
    %281 = vmatpush.msra.mxu0 0.0
    %282 = vmatpush.msra.mxu0 0.0
    %283 = vmatpush.msra.mxu0 0.0
    %284 = vmatpush.msra.mxu0 %v263
    %285 = vmatmul.f32.gmra.mxu0 %v267
    %v286 = vpop.f32.mrf.mxu0
    %v287 = vadd.f32 0.0, %v286
    %288 = vdwg.mxu0
    %v289 = vadd.f32 %v258, %v287
    %v290 = vxor.u32 %v289, 2147483648
    %v291 = vmul.f32 %v290, 1.442695
    %v292 = vpow.pop %v291
    %v293 = vadd.f32 %v292, 1.0
    %v294 = vrcp.pop %v293
    %v295 = vmul.f32 %v293, %v294
    %v296 = vsub.f32 1.0, %v295
    %v297 = vmul.f32 %v294, %v296
    %v298 = vadd.f32 %v294, %v297
    %vm299 = vweird.f32 %v293
    %vm300 = vweird.f32 %v294
    %vm301 = vmor %vm299, %vm300
    %v302 = vsel %vm301, %v294, %v298
    %v303 = vand.u32 2147483647, %v293
    %vm304 = vcmp.eq.f32.partialorder %v303, 8.507059e+37
    %v305 = vand.u32 %v293, 2147483648
    %v306 = vor.u32 1.1754944e-38, %v305
    %v307 = vsel %vm304, %v306, %v302
    %v308 = vmul.f32 1.0, %v307
    %v309 = vtanh.pop %v289
    %v310 = vmul.f32 %v308, 0.0
    %312 = vrot.lane.b32.xlu0 %v309, 104
    %v313 = vpop.permute.xlu0 %312
    %v315 = vmul.f32 %v308, %v313
    %317 = vrot.lane.b32.xlu0 %v315, 8
    %v318 = vpop.permute.xlu0 %317
    %v320 = vadd.f32 %v310, %v318
    %v321 = vtanh.pop %v320
    %323 = vrot.lane.b32.xlu0 %v321, 8
    %v324 = vpop.permute.xlu0 %323
    %v326 = vmul.f32 %v308, %v324
    %328 = vrot.lane.b32.xlu0 %v326, 112
    %v329 = vpop.permute.xlu0 %328
    %vm331 = vcmask 58368
    %332 = vst.msk [vmem:[#allocation2] sm:$0x3] %vm331, %v329
    %v333 = vsel %vm265, %v329, 0
    %335 = vmatpush.msra.mxu0 0.0
    %336 = vmatpush.msra.mxu0 0.0
    %337 = vmatpush.msra.mxu0 0.0
    %338 = vmatpush.msra.mxu0 0.0
    %339 = vmatpush.msra.mxu0 0.0
    %340 = vmatpush.msra.mxu0 0.0
    %341 = vmatpush.msra.mxu0 0.0
    %342 = vmatpush.msra.mxu0 0.0
    %343 = vmatpush.msra.mxu0 0.0
    %344 = vmatpush.msra.mxu0 0.0
    %345 = vmatpush.msra.mxu0 0.0
    %346 = vmatpush.msra.mxu0 0.0
    %347 = vmatpush.msra.mxu0 0.0
    %348 = vmatpush.msra.mxu0 0.0
    %349 = vmatpush.msra.mxu0 0.0
    %350 = vmatpush.msra.mxu0 %v263
    %351 = vmatmul.f32.gmra.mxu0 %v333
    %v352 = vpop.f32.mrf.mxu0
    %v353 = vadd.f32 0.0, %v352
    %354 = vdwg.mxu0
    %v356 = vrot.slane %v353, 6
    %v358 = vadd.f32 %v258, %v356
    %v359 = vxor.u32 %v358, 2147483648
    %v360 = vmul.f32 %v359, 1.442695
    %v361 = vpow.pop %v360
    %v362 = vadd.f32 %v361, 1.0
    %v363 = vrcp.pop %v362
    %v364 = vmul.f32 %v362, %v363
    %v365 = vsub.f32 1.0, %v364
    %v366 = vmul.f32 %v363, %v365
    %v367 = vadd.f32 %v363, %v366
    %vm368 = vweird.f32 %v362
    %vm369 = vweird.f32 %v363
    %vm370 = vmor %vm368, %vm369
    %v371 = vsel %vm370, %v363, %v367
    %v372 = vand.u32 2147483647, %v362
    %vm373 = vcmp.eq.f32.partialorder %v372, 8.507059e+37
    %v374 = vand.u32 %v362, 2147483648
    %v375 = vor.u32 1.1754944e-38, %v374
    %v376 = vsel %vm373, %v375, %v371
    %v377 = vmul.f32 1.0, %v376
    %v378 = vtanh.pop %v358
    %v380 = vrot.slane %v320, 6
    %v382 = vmul.f32 %v377, %v380
    %384 = vrot.lane.b32.xlu0 %v378, 104
    %v385 = vpop.permute.xlu0 %384
    %v387 = vmul.f32 %v377, %v385
    %389 = vrot.lane.b32.xlu0 %v387, 8
    %v390 = vpop.permute.xlu0 %389
    %v392 = vadd.f32 %v382, %v390
    %v393 = vtanh.pop %v392
    %395 = vrot.lane.b32.xlu0 %v393, 8
    %v396 = vpop.permute.xlu0 %395
    %v398 = vmul.f32 %v377, %v396
    %400 = vrot.lane.b32.xlu0 %v398, 112
    %v401 = vpop.permute.xlu0 %400
    %vm403 = vcmask 60418
    %404 = vst.msk [vmem:[#allocation2] sm:$0xc] %vm403, %v401
    %v405 = vrot.slane %v398, 2
    %406 = vrot.lane.b32.xlu0 %v405, 112
    %v407 = vpop.permute.xlu0 %406
    %v408 = vsel %vm265, %v407, 0
    %410 = vmatpush.msra.mxu0 0.0
    %411 = vmatpush.msra.mxu0 0.0
    %412 = vmatpush.msra.mxu0 0.0
    %413 = vmatpush.msra.mxu0 0.0
    %414 = vmatpush.msra.mxu0 0.0
    %415 = vmatpush.msra.mxu0 0.0
    %416 = vmatpush.msra.mxu0 0.0
    %417 = vmatpush.msra.mxu0 0.0
    %418 = vmatpush.msra.mxu0 0.0
    %419 = vmatpush.msra.mxu0 0.0
    %420 = vmatpush.msra.mxu0 0.0
    %421 = vmatpush.msra.mxu0 0.0
    %422 = vmatpush.msra.mxu0 0.0
    %423 = vmatpush.msra.mxu0 0.0
    %424 = vmatpush.msra.mxu0 0.0
    %425 = vmatpush.msra.mxu0 %v263
    %426 = vmatmul.f32.gmra.mxu0 %v408
    %v427 = vpop.f32.mrf.mxu0
    %v428 = vadd.f32 0.0, %v427
    %429 = vdwg.mxu0
    %v431 = vrot.slane %v428, 4
    %v433 = vadd.f32 %v258, %v431
    %v434 = vxor.u32 %v433, 2147483648
    %v435 = vmul.f32 %v434, 1.442695
    %v436 = vpow.pop %v435
    %v437 = vadd.f32 %v436, 1.0
    %v438 = vrcp.pop %v437
    %v439 = vmul.f32 %v437, %v438
    %v440 = vsub.f32 1.0, %v439
    %v441 = vmul.f32 %v438, %v440
    %v442 = vadd.f32 %v438, %v441
    %vm443 = vweird.f32 %v437
    %vm444 = vweird.f32 %v438
    %vm445 = vmor %vm443, %vm444
    %v446 = vsel %vm445, %v438, %v442
    %v447 = vand.u32 2147483647, %v437
    %vm448 = vcmp.eq.f32.partialorder %v447, 8.507059e+37
    %v449 = vand.u32 %v437, 2147483648
    %v450 = vor.u32 1.1754944e-38, %v449
    %v451 = vsel %vm448, %v450, %v446
    %v452 = vmul.f32 1.0, %v451
    %v453 = vtanh.pop %v433
    %v455 = vrot.slane %v392, 6
    %v457 = vmul.f32 %v452, %v455
    %459 = vrot.lane.b32.xlu0 %v453, 104
    %v460 = vpop.permute.xlu0 %459
    %v462 = vmul.f32 %v452, %v460
    %464 = vrot.lane.b32.xlu0 %v462, 8
    %v465 = vpop.permute.xlu0 %464
    %v467 = vadd.f32 %v457, %v465
    %v468 = vtanh.pop %v467
    %470 = vrot.lane.b32.xlu0 %v468, 8
    %v471 = vpop.permute.xlu0 %470
    %v473 = vmul.f32 %v452, %v471
    %475 = vrot.lane.b32.xlu0 %v473, 112
    %v476 = vpop.permute.xlu0 %475
    %vm478 = vcmask 62468
    %479 = vst.msk [vmem:[#allocation2] sm:$0x30] %vm478, %v476
    %v480 = vrot.slane %v473, 4
    %481 = vrot.lane.b32.xlu0 %v480, 112
    %v482 = vpop.permute.xlu0 %481
    %v483 = vsel %vm265, %v482, 0
    %485 = vmatpush.msra.mxu0 0.0
    %486 = vmatpush.msra.mxu0 0.0
    %487 = vmatpush.msra.mxu0 0.0
    %488 = vmatpush.msra.mxu0 0.0
    %489 = vmatpush.msra.mxu0 0.0
    %490 = vmatpush.msra.mxu0 0.0
    %491 = vmatpush.msra.mxu0 0.0
    %492 = vmatpush.msra.mxu0 0.0
    %493 = vmatpush.msra.mxu0 0.0
    %494 = vmatpush.msra.mxu0 0.0
    %495 = vmatpush.msra.mxu0 0.0
    %496 = vmatpush.msra.mxu0 0.0
    %497 = vmatpush.msra.mxu0 0.0
    %498 = vmatpush.msra.mxu0 0.0
    %499 = vmatpush.msra.mxu0 0.0
    %500 = vmatpush.msra.mxu0 %v263
    %501 = vmatmul.f32.gmra.mxu0 %v483
    %v502 = vpop.f32.mrf.mxu0
    %v503 = vadd.f32 0.0, %v502
    %504 = vdwg.mxu0
    %v506 = vrot.slane %v503, 2
    %v508 = vadd.f32 %v258, %v506
    %v509 = vxor.u32 %v508, 2147483648
    %v510 = vmul.f32 %v509, 1.442695
    %v511 = vpow.pop %v510
    %v512 = vadd.f32 %v511, 1.0
    %v513 = vrcp.pop %v512
    %v514 = vmul.f32 %v512, %v513
    %v515 = vsub.f32 1.0, %v514
    %v516 = vmul.f32 %v513, %v515
    %v517 = vadd.f32 %v513, %v516
    %vm518 = vweird.f32 %v512
    %vm519 = vweird.f32 %v513
    %vm520 = vmor %vm518, %vm519
    %v521 = vsel %vm520, %v513, %v517
    %v522 = vand.u32 2147483647, %v512
    %vm523 = vcmp.eq.f32.partialorder %v522, 8.507059e+37
    %v524 = vand.u32 %v512, 2147483648
    %v525 = vor.u32 1.1754944e-38, %v524
    %v526 = vsel %vm523, %v525, %v521
    %v527 = vmul.f32 1.0, %v526
    %v528 = vtanh.pop %v508
    %v530 = vrot.slane %v467, 6
    %v532 = vmul.f32 %v527, %v530
    %534 = vrot.lane.b32.xlu0 %v528, 104
    %v535 = vpop.permute.xlu0 %534
    %v537 = vmul.f32 %v527, %v535
    %539 = vrot.lane.b32.xlu0 %v537, 8
    %v540 = vpop.permute.xlu0 %539
    %v542 = vadd.f32 %v532, %v540
    %v543 = vtanh.pop %v542
    %545 = vrot.lane.b32.xlu0 %v543, 8
    %v546 = vpop.permute.xlu0 %545
    %v548 = vmul.f32 %v527, %v546
    %550 = vrot.lane.b32.xlu0 %v548, 112
    %v551 = vpop.permute.xlu0 %550
    %vm553 = vcmask 64518
    %554 = vst.msk [vmem:[#allocation2] sm:$0xc0] %vm553, %v551
    %v555 = vrot.slane %v548, 6
    %556 = vrot.lane.b32.xlu0 %v555, 112
    %v557 = vpop.permute.xlu0 %556
    %v558 = vsel %vm265, %v557, 0
    %560 = vmatpush.msra.mxu0 0.0
    %561 = vmatpush.msra.mxu0 0.0
    %562 = vmatpush.msra.mxu0 0.0
    %563 = vmatpush.msra.mxu0 0.0
    %564 = vmatpush.msra.mxu0 0.0
    %565 = vmatpush.msra.mxu0 0.0
    %566 = vmatpush.msra.mxu0 0.0
    %567 = vmatpush.msra.mxu0 0.0
    %568 = vmatpush.msra.mxu0 0.0
    %569 = vmatpush.msra.mxu0 0.0
    %570 = vmatpush.msra.mxu0 0.0
    %571 = vmatpush.msra.mxu0 0.0
    %572 = vmatpush.msra.mxu0 0.0
    %573 = vmatpush.msra.mxu0 0.0
    %574 = vmatpush.msra.mxu0 0.0
    %575 = vmatpush.msra.mxu0 %v263
    %576 = vmatmul.f32.gmra.mxu0 %v558
    %v577 = vpop.f32.mrf.mxu0
    %v578 = vadd.f32 0.0, %v577
    %579 = vdwg.mxu0
    %v580 = vadd.f32 %v261, %v578
    %v581 = vxor.u32 %v580, 2147483648
    %v582 = vmul.f32 %v581, 1.442695
    %v583 = vpow.pop %v582
    %v584 = vadd.f32 %v583, 1.0
    %v585 = vrcp.pop %v584
    %v586 = vmul.f32 %v584, %v585
    %v587 = vsub.f32 1.0, %v586
    %v588 = vmul.f32 %v585, %v587
    %v589 = vadd.f32 %v585, %v588
    %vm590 = vweird.f32 %v584
    %vm591 = vweird.f32 %v585
    %vm592 = vmor %vm590, %vm591
    %v593 = vsel %vm592, %v585, %v589
    %v594 = vand.u32 2147483647, %v584
    %vm595 = vcmp.eq.f32.partialorder %v594, 8.507059e+37
    %v596 = vand.u32 %v584, 2147483648
    %v597 = vor.u32 1.1754944e-38, %v596
    %v598 = vsel %vm595, %v597, %v593
    %v599 = vmul.f32 1.0, %v598
    %v600 = vtanh.pop %v580
    %v602 = vrot.slane %v542, 6
    %v604 = vmul.f32 %v599, %v602
    %606 = vrot.lane.b32.xlu0 %v600, 104
    %v607 = vpop.permute.xlu0 %606
    %v609 = vmul.f32 %v599, %v607
    %611 = vrot.lane.b32.xlu0 %v609, 8
    %v612 = vpop.permute.xlu0 %611
    %v614 = vadd.f32 %v604, %v612
    %v615 = vtanh.pop %v614
    %617 = vrot.lane.b32.xlu0 %v615, 8
    %v618 = vpop.permute.xlu0 %617
    %v620 = vmul.f32 %v599, %v618
    %622 = vrot.lane.b32.xlu0 %v620, 112
    %v623 = vpop.permute.xlu0 %622
    %625 = vst.msk [vmem:[#allocation2 + $0x8] sm:$0x3] %vm331, %v623
    %v626 = vsel %vm265, %v623, 0
    %628 = vmatpush.msra.mxu0 0.0
    %629 = vmatpush.msra.mxu0 0.0
    %630 = vmatpush.msra.mxu0 0.0
    %631 = vmatpush.msra.mxu0 0.0
    %632 = vmatpush.msra.mxu0 0.0
    %633 = vmatpush.msra.mxu0 0.0
    %634 = vmatpush.msra.mxu0 0.0
    %635 = vmatpush.msra.mxu0 0.0
    %636 = vmatpush.msra.mxu0 0.0
    %637 = vmatpush.msra.mxu0 0.0
    %638 = vmatpush.msra.mxu0 0.0
    %639 = vmatpush.msra.mxu0 0.0
    %640 = vmatpush.msra.mxu0 0.0
    %641 = vmatpush.msra.mxu0 0.0
    %642 = vmatpush.msra.mxu0 0.0
    %643 = vmatpush.msra.mxu0 %v263
    %644 = vmatmul.f32.gmra.mxu0 %v626
    %v645 = vpop.f32.mrf.mxu0
    %v646 = vadd.f32 0.0, %v645
    %647 = vdwg.mxu0
    %v649 = vrot.slane %v646, 6
    %v651 = vadd.f32 %v261, %v649
    %v652 = vxor.u32 %v651, 2147483648
    %v653 = vmul.f32 %v652, 1.442695
    %v654 = vpow.pop %v653
    %v655 = vadd.f32 %v654, 1.0
    %v656 = vrcp.pop %v655
    %v657 = vmul.f32 %v655, %v656
    %v658 = vsub.f32 1.0, %v657
    %v659 = vmul.f32 %v656, %v658
    %v660 = vadd.f32 %v656, %v659
    %vm661 = vweird.f32 %v655
    %vm662 = vweird.f32 %v656
    %vm663 = vmor %vm661, %vm662
    %v664 = vsel %vm663, %v656, %v660
    %v665 = vand.u32 2147483647, %v655
    %vm666 = vcmp.eq.f32.partialorder %v665, 8.507059e+37
    %v667 = vand.u32 %v655, 2147483648
    %v668 = vor.u32 1.1754944e-38, %v667
    %v669 = vsel %vm666, %v668, %v664
    %v670 = vmul.f32 1.0, %v669
    %v671 = vtanh.pop %v651
    %v673 = vrot.slane %v614, 6
    %v675 = vmul.f32 %v670, %v673
    %677 = vrot.lane.b32.xlu0 %v671, 104
    %v678 = vpop.permute.xlu0 %677
    %v680 = vmul.f32 %v670, %v678
    %682 = vrot.lane.b32.xlu0 %v680, 8
    %v683 = vpop.permute.xlu0 %682
    %v685 = vadd.f32 %v675, %v683
    %v686 = vtanh.pop %v685
    %688 = vrot.lane.b32.xlu0 %v686, 8
    %v689 = vpop.permute.xlu0 %688
    %v691 = vmul.f32 %v670, %v689
    %693 = vrot.lane.b32.xlu0 %v691, 112
    %v694 = vpop.permute.xlu0 %693
    %696 = vst.msk [vmem:[#allocation2 + $0x8] sm:$0xc] %vm403, %v694
    %v697 = vrot.slane %v691, 2
    %698 = vrot.lane.b32.xlu0 %v697, 112
    %v699 = vpop.permute.xlu0 %698
    %v700 = vsel %vm265, %v699, 0
    %702 = vmatpush.msra.mxu0 0.0
    %703 = vmatpush.msra.mxu0 0.0
    %704 = vmatpush.msra.mxu0 0.0
    %705 = vmatpush.msra.mxu0 0.0
    %706 = vmatpush.msra.mxu0 0.0
    %707 = vmatpush.msra.mxu0 0.0
    %708 = vmatpush.msra.mxu0 0.0
    %709 = vmatpush.msra.mxu0 0.0
    %710 = vmatpush.msra.mxu0 0.0
    %711 = vmatpush.msra.mxu0 0.0
    %712 = vmatpush.msra.mxu0 0.0
    %713 = vmatpush.msra.mxu0 0.0
    %714 = vmatpush.msra.mxu0 0.0
    %715 = vmatpush.msra.mxu0 0.0
    %716 = vmatpush.msra.mxu0 0.0
    %717 = vmatpush.msra.mxu0 %v263
    %718 = vmatmul.f32.gmra.mxu0 %v700
    %v719 = vpop.f32.mrf.mxu0
    %v720 = vadd.f32 0.0, %v719
    %721 = vdwg.mxu0
    %v723 = vrot.slane %v720, 4
    %v725 = vadd.f32 %v261, %v723
    %v726 = vxor.u32 %v725, 2147483648
    %v727 = vmul.f32 %v726, 1.442695
    %v728 = vpow.pop %v727
    %v729 = vadd.f32 %v728, 1.0
    %v730 = vrcp.pop %v729
    %v731 = vmul.f32 %v729, %v730
    %v732 = vsub.f32 1.0, %v731
    %v733 = vmul.f32 %v730, %v732
    %v734 = vadd.f32 %v730, %v733
    %vm735 = vweird.f32 %v729
    %vm736 = vweird.f32 %v730
    %vm737 = vmor %vm735, %vm736
    %v738 = vsel %vm737, %v730, %v734
    %v739 = vand.u32 2147483647, %v729
    %vm740 = vcmp.eq.f32.partialorder %v739, 8.507059e+37
    %v741 = vand.u32 %v729, 2147483648
    %v742 = vor.u32 1.1754944e-38, %v741
    %v743 = vsel %vm740, %v742, %v738
    %v744 = vmul.f32 1.0, %v743
    %v745 = vtanh.pop %v725
    %v747 = vrot.slane %v685, 6
    %v749 = vmul.f32 %v744, %v747
    %751 = vrot.lane.b32.xlu0 %v745, 104
    %v752 = vpop.permute.xlu0 %751
    %v754 = vmul.f32 %v744, %v752
    %756 = vrot.lane.b32.xlu0 %v754, 8
    %v757 = vpop.permute.xlu0 %756
    %v759 = vadd.f32 %v749, %v757
    %v760 = vtanh.pop %v759
    %762 = vrot.lane.b32.xlu0 %v760, 8
    %v763 = vpop.permute.xlu0 %762
    %v765 = vmul.f32 %v744, %v763
    %767 = vrot.lane.b32.xlu0 %v765, 112
    %v768 = vpop.permute.xlu0 %767
    %770 = vst.msk [vmem:[#allocation2 + $0x8] sm:$0x30] %vm478, %v768
    %v771 = vrot.slane %v765, 4
    %772 = vrot.lane.b32.xlu0 %v771, 112
    %v773 = vpop.permute.xlu0 %772
    %v774 = vsel %vm265, %v773, 0
    %776 = vmatpush.msra.mxu0 0.0
    %777 = vmatpush.msra.mxu0 0.0
    %778 = vmatpush.msra.mxu0 0.0
    %779 = vmatpush.msra.mxu0 0.0
    %780 = vmatpush.msra.mxu0 0.0
    %781 = vmatpush.msra.mxu0 0.0
    %782 = vmatpush.msra.mxu0 0.0
    %783 = vmatpush.msra.mxu0 0.0
    %784 = vmatpush.msra.mxu0 0.0
    %785 = vmatpush.msra.mxu0 0.0
    %786 = vmatpush.msra.mxu0 0.0
    %787 = vmatpush.msra.mxu0 0.0
    %788 = vmatpush.msra.mxu0 0.0
    %789 = vmatpush.msra.mxu0 0.0
    %790 = vmatpush.msra.mxu0 0.0
    %791 = vmatpush.msra.mxu0 %v263
    %792 = vmatmul.f32.gmra.mxu0 %v774
    %v793 = vpop.f32.mrf.mxu0
    %v794 = vadd.f32 0.0, %v793
    %795 = vdwg.mxu0
    %v797 = vrot.slane %v794, 2
    %v799 = vadd.f32 %v261, %v797
    %v800 = vxor.u32 %v799, 2147483648
    %v801 = vmul.f32 %v800, 1.442695
    %v802 = vpow.pop %v801
    %v803 = vadd.f32 %v802, 1.0
    %v804 = vrcp.pop %v803
    %v805 = vmul.f32 %v803, %v804
    %v806 = vsub.f32 1.0, %v805
    %v807 = vmul.f32 %v804, %v806
    %v808 = vadd.f32 %v804, %v807
    %vm809 = vweird.f32 %v803
    %vm810 = vweird.f32 %v804
    %vm811 = vmor %vm809, %vm810
    %v812 = vsel %vm811, %v804, %v808
    %v813 = vand.u32 2147483647, %v803
    %vm814 = vcmp.eq.f32.partialorder %v813, 8.507059e+37
    %v815 = vand.u32 %v803, 2147483648
    %v816 = vor.u32 1.1754944e-38, %v815
    %v817 = vsel %vm814, %v816, %v812
    %v818 = vmul.f32 1.0, %v817
    %v819 = vtanh.pop %v799
    %v821 = vrot.slane %v759, 6
    %v823 = vmul.f32 %v818, %v821
    %825 = vrot.lane.b32.xlu0 %v819, 104
    %v826 = vpop.permute.xlu0 %825
    %v828 = vmul.f32 %v818, %v826
    %830 = vrot.lane.b32.xlu0 %v828, 8
    %v831 = vpop.permute.xlu0 %830
    %v833 = vadd.f32 %v823, %v831
    %v834 = vtanh.pop %v833
    %836 = vrot.lane.b32.xlu0 %v834, 8
    %v837 = vpop.permute.xlu0 %836
    %v839 = vmul.f32 %v818, %v837
    %841 = vrot.lane.b32.xlu0 %v839, 112
    %v842 = vpop.permute.xlu0 %841
    %844 = vst.msk [vmem:[#allocation2 + $0x8] sm:$0xc0] %vm553, %v842
    %v845 = vld [vmem:[#allocation2] sm:$0xff]
    %v846 = vld [vmem:[#allocation2 + $0x8] sm:$0xff]
    %v847 = vld [vmem:[#allocation5] sm:$0xff]
    %v848 = vld [vmem:[%s8] sm:$0x1]
    %v850 = vperm.slane %v848, 0
    %v853 = vsel %vm265, %v845, 0
    %v856 = vsel %vm265, %v846, 0
    %858 = vmatpush.msra.mxu0 0.0
    %859 = vmatpush.msra.mxu0 0.0
    %860 = vmatpush.msra.mxu0 0.0
    %861 = vmatpush.msra.mxu0 0.0
    %862 = vmatpush.msra.mxu0 0.0
    %863 = vmatpush.msra.mxu0 0.0
    %864 = vmatpush.msra.mxu0 0.0
    %865 = vmatpush.msra.mxu0 0.0
    %866 = vmatpush.msra.mxu0 0.0
    %867 = vmatpush.msra.mxu0 0.0
    %868 = vmatpush.msra.mxu0 0.0
    %869 = vmatpush.msra.mxu0 0.0
    %870 = vmatpush.msra.mxu0 0.0
    %871 = vmatpush.msra.mxu0 0.0
    %872 = vmatpush.msra.mxu0 0.0
    %873 = vmatpush.msra.mxu0 %v847
    %874 = vmatmul.f32.gmra.mxu0 %v853
    %v875 = vpop.f32.mrf.mxu0
    %v876 = vadd.f32 %v850, %v875
    %877 = vmatmul.f32.gmra.mxu0 %v856
    %v878 = vpop.f32.mrf.mxu0
    %v879 = vadd.f32 %v850, %v878
    %880 = vdwg.mxu0
    %881 = vmatpush.msra.mxu0 0.0
    %882 = vmatpush.msra.mxu0 0.0
    %883 = vmatpush.msra.mxu0 0.0
    %884 = vmatpush.msra.mxu0 0.0
    %885 = vmatpush.msra.mxu0 0.0
    %886 = vmatpush.msra.mxu0 0.0
    %887 = vmatpush.msra.mxu0 0.0
    %888 = vmatpush.msra.mxu0 0.0
    %889 = vmatpush.msra.mxu0 0.0
    %890 = vmatpush.msra.mxu0 0.0
    %891 = vmatpush.msra.mxu0 0.0
    %892 = vmatpush.msra.mxu0 0.0
    %893 = vmatpush.msra.mxu0 0.0
    %894 = vmatpush.msra.mxu0 0.0
    %895 = vmatpush.msra.mxu0 0.0
    %896 = vmatpush.msra.mxu0 %v264
    %897 = vmatmul.f32.gmra.mxu0 %v267
    %v898 = vpop.f32.mrf.mxu0
    %v899 = vadd.f32 0.0, %v898
    %900 = vdwg.mxu0
    %v901 = vadd.f32 %v876, %v899
    %v902 = vxor.u32 %v901, 2147483648
    %v903 = vmul.f32 %v902, 1.442695
    %v904 = vpow.pop %v903
    %v905 = vadd.f32 %v904, 1.0
    %v906 = vrcp.pop %v905
    %v907 = vmul.f32 %v905, %v906
    %v908 = vsub.f32 1.0, %v907
    %v909 = vmul.f32 %v906, %v908
    %v910 = vadd.f32 %v906, %v909
    %vm911 = vweird.f32 %v905
    %vm912 = vweird.f32 %v906
    %vm913 = vmor %vm911, %vm912
    %v914 = vsel %vm913, %v906, %v910
    %v915 = vand.u32 2147483647, %v905
    %vm916 = vcmp.eq.f32.partialorder %v915, 8.507059e+37
    %v917 = vand.u32 %v905, 2147483648
    %v918 = vor.u32 1.1754944e-38, %v917
    %v919 = vsel %vm916, %v918, %v914
    %v920 = vmul.f32 1.0, %v919
    %v921 = vtanh.pop %v901
    %v922 = vmul.f32 %v920, 0.0
    %924 = vrot.lane.b32.xlu0 %v921, 104
    %v925 = vpop.permute.xlu0 %924
    %v927 = vmul.f32 %v920, %v925
    %929 = vrot.lane.b32.xlu0 %v927, 8
    %v930 = vpop.permute.xlu0 %929
    %v932 = vadd.f32 %v922, %v930
    %v933 = vtanh.pop %v932
    %935 = vrot.lane.b32.xlu0 %v933, 8
    %v936 = vpop.permute.xlu0 %935
    %v938 = vmul.f32 %v920, %v936
    %940 = vrot.lane.b32.xlu0 %v938, 112
    %v941 = vpop.permute.xlu0 %940
    %943 = vst.msk [vmem:[#allocation3] sm:$0x3] %vm331, %v941
    %v944 = vsel %vm265, %v941, 0
    %946 = vmatpush.msra.mxu0 0.0
    %947 = vmatpush.msra.mxu0 0.0
    %948 = vmatpush.msra.mxu0 0.0
    %949 = vmatpush.msra.mxu0 0.0
    %950 = vmatpush.msra.mxu0 0.0
    %951 = vmatpush.msra.mxu0 0.0
    %952 = vmatpush.msra.mxu0 0.0
    %953 = vmatpush.msra.mxu0 0.0
    %954 = vmatpush.msra.mxu0 0.0
    %955 = vmatpush.msra.mxu0 0.0
    %956 = vmatpush.msra.mxu0 0.0
    %957 = vmatpush.msra.mxu0 0.0
    %958 = vmatpush.msra.mxu0 0.0
    %959 = vmatpush.msra.mxu0 0.0
    %960 = vmatpush.msra.mxu0 0.0
    %961 = vmatpush.msra.mxu0 %v264
    %962 = vmatmul.f32.gmra.mxu0 %v944
    %v963 = vpop.f32.mrf.mxu0
    %v964 = vadd.f32 0.0, %v963
    %965 = vdwg.mxu0
    %v967 = vrot.slane %v964, 6
    %v969 = vadd.f32 %v876, %v967
    %v970 = vxor.u32 %v969, 2147483648
    %v971 = vmul.f32 %v970, 1.442695
    %v972 = vpow.pop %v971
    %v973 = vadd.f32 %v972, 1.0
    %v974 = vrcp.pop %v973
    %v975 = vmul.f32 %v973, %v974
    %v976 = vsub.f32 1.0, %v975
    %v977 = vmul.f32 %v974, %v976
    %v978 = vadd.f32 %v974, %v977
    %vm979 = vweird.f32 %v973
    %vm980 = vweird.f32 %v974
    %vm981 = vmor %vm979, %vm980
    %v982 = vsel %vm981, %v974, %v978
    %v983 = vand.u32 2147483647, %v973
    %vm984 = vcmp.eq.f32.partialorder %v983, 8.507059e+37
    %v985 = vand.u32 %v973, 2147483648
    %v986 = vor.u32 1.1754944e-38, %v985
    %v987 = vsel %vm984, %v986, %v982
    %v988 = vmul.f32 1.0, %v987
    %v989 = vtanh.pop %v969
    %v991 = vrot.slane %v932, 6
    %v993 = vmul.f32 %v988, %v991
    %995 = vrot.lane.b32.xlu0 %v989, 104
    %v996 = vpop.permute.xlu0 %995
    %v998 = vmul.f32 %v988, %v996
    %1000 = vrot.lane.b32.xlu0 %v998, 8
    %v1001 = vpop.permute.xlu0 %1000
    %v1003 = vadd.f32 %v993, %v1001
    %v1004 = vtanh.pop %v1003
    %1006 = vrot.lane.b32.xlu0 %v1004, 8
    %v1007 = vpop.permute.xlu0 %1006
    %v1009 = vmul.f32 %v988, %v1007
    %1011 = vrot.lane.b32.xlu0 %v1009, 112
    %v1012 = vpop.permute.xlu0 %1011
    %1014 = vst.msk [vmem:[#allocation3] sm:$0xc] %vm403, %v1012
    %v1015 = vrot.slane %v1009, 2
    %1016 = vrot.lane.b32.xlu0 %v1015, 112
    %v1017 = vpop.permute.xlu0 %1016
    %v1018 = vsel %vm265, %v1017, 0
    %1020 = vmatpush.msra.mxu0 0.0
    %1021 = vmatpush.msra.mxu0 0.0
    %1022 = vmatpush.msra.mxu0 0.0
    %1023 = vmatpush.msra.mxu0 0.0
    %1024 = vmatpush.msra.mxu0 0.0
    %1025 = vmatpush.msra.mxu0 0.0
    %1026 = vmatpush.msra.mxu0 0.0
    %1027 = vmatpush.msra.mxu0 0.0
    %1028 = vmatpush.msra.mxu0 0.0
    %1029 = vmatpush.msra.mxu0 0.0
    %1030 = vmatpush.msra.mxu0 0.0
    %1031 = vmatpush.msra.mxu0 0.0
    %1032 = vmatpush.msra.mxu0 0.0
    %1033 = vmatpush.msra.mxu0 0.0
    %1034 = vmatpush.msra.mxu0 0.0
    %1035 = vmatpush.msra.mxu0 %v264
    %1036 = vmatmul.f32.gmra.mxu0 %v1018
    %v1037 = vpop.f32.mrf.mxu0
    %v1038 = vadd.f32 0.0, %v1037
    %1039 = vdwg.mxu0
    %v1041 = vrot.slane %v1038, 4
    %v1043 = vadd.f32 %v876, %v1041
    %v1044 = vxor.u32 %v1043, 2147483648
    %v1045 = vmul.f32 %v1044, 1.442695
    %v1046 = vpow.pop %v1045
    %v1047 = vadd.f32 %v1046, 1.0
    %v1048 = vrcp.pop %v1047
    %v1049 = vmul.f32 %v1047, %v1048
    %v1050 = vsub.f32 1.0, %v1049
    %v1051 = vmul.f32 %v1048, %v1050
    %v1052 = vadd.f32 %v1048, %v1051
    %vm1053 = vweird.f32 %v1047
    %vm1054 = vweird.f32 %v1048
    %vm1055 = vmor %vm1053, %vm1054
    %v1056 = vsel %vm1055, %v1048, %v1052
    %v1057 = vand.u32 2147483647, %v1047
    %vm1058 = vcmp.eq.f32.partialorder %v1057, 8.507059e+37
    %v1059 = vand.u32 %v1047, 2147483648
    %v1060 = vor.u32 1.1754944e-38, %v1059
    %v1061 = vsel %vm1058, %v1060, %v1056
    %v1062 = vmul.f32 1.0, %v1061
    %v1063 = vtanh.pop %v1043
    %v1065 = vrot.slane %v1003, 6
    %v1067 = vmul.f32 %v1062, %v1065
    %1069 = vrot.lane.b32.xlu0 %v1063, 104
    %v1070 = vpop.permute.xlu0 %1069
    %v1072 = vmul.f32 %v1062, %v1070
    %1074 = vrot.lane.b32.xlu0 %v1072, 8
    %v1075 = vpop.permute.xlu0 %1074
    %v1077 = vadd.f32 %v1067, %v1075
    %v1078 = vtanh.pop %v1077
    %1080 = vrot.lane.b32.xlu0 %v1078, 8
    %v1081 = vpop.permute.xlu0 %1080
    %v1083 = vmul.f32 %v1062, %v1081
    %1085 = vrot.lane.b32.xlu0 %v1083, 112
    %v1086 = vpop.permute.xlu0 %1085
    %1088 = vst.msk [vmem:[#allocation3] sm:$0x30] %vm478, %v1086
    %v1089 = vrot.slane %v1083, 4
    %1090 = vrot.lane.b32.xlu0 %v1089, 112
    %v1091 = vpop.permute.xlu0 %1090
    %v1092 = vsel %vm265, %v1091, 0
    %1094 = vmatpush.msra.mxu0 0.0
    %1095 = vmatpush.msra.mxu0 0.0
    %1096 = vmatpush.msra.mxu0 0.0
    %1097 = vmatpush.msra.mxu0 0.0
    %1098 = vmatpush.msra.mxu0 0.0
    %1099 = vmatpush.msra.mxu0 0.0
    %1100 = vmatpush.msra.mxu0 0.0
    %1101 = vmatpush.msra.mxu0 0.0
    %1102 = vmatpush.msra.mxu0 0.0
    %1103 = vmatpush.msra.mxu0 0.0
    %1104 = vmatpush.msra.mxu0 0.0
    %1105 = vmatpush.msra.mxu0 0.0
    %1106 = vmatpush.msra.mxu0 0.0
    %1107 = vmatpush.msra.mxu0 0.0
    %1108 = vmatpush.msra.mxu0 0.0
    %1109 = vmatpush.msra.mxu0 %v264
    %1110 = vmatmul.f32.gmra.mxu0 %v1092
    %v1111 = vpop.f32.mrf.mxu0
    %v1112 = vadd.f32 0.0, %v1111
    %1113 = vdwg.mxu0
    %v1115 = vrot.slane %v1112, 2
    %v1117 = vadd.f32 %v876, %v1115
    %v1118 = vxor.u32 %v1117, 2147483648
    %v1119 = vmul.f32 %v1118, 1.442695
    %v1120 = vpow.pop %v1119
    %v1121 = vadd.f32 %v1120, 1.0
    %v1122 = vrcp.pop %v1121
    %v1123 = vmul.f32 %v1121, %v1122
    %v1124 = vsub.f32 1.0, %v1123
    %v1125 = vmul.f32 %v1122, %v1124
    %v1126 = vadd.f32 %v1122, %v1125
    %vm1127 = vweird.f32 %v1121
    %vm1128 = vweird.f32 %v1122
    %vm1129 = vmor %vm1127, %vm1128
    %v1130 = vsel %vm1129, %v1122, %v1126
    %v1131 = vand.u32 2147483647, %v1121
    %vm1132 = vcmp.eq.f32.partialorder %v1131, 8.507059e+37
    %v1133 = vand.u32 %v1121, 2147483648
    %v1134 = vor.u32 1.1754944e-38, %v1133
    %v1135 = vsel %vm1132, %v1134, %v1130
    %v1136 = vmul.f32 1.0, %v1135
    %v1137 = vtanh.pop %v1117
    %v1139 = vrot.slane %v1077, 6
    %v1141 = vmul.f32 %v1136, %v1139
    %1143 = vrot.lane.b32.xlu0 %v1137, 104
    %v1144 = vpop.permute.xlu0 %1143
    %v1146 = vmul.f32 %v1136, %v1144
    %1148 = vrot.lane.b32.xlu0 %v1146, 8
    %v1149 = vpop.permute.xlu0 %1148
    %v1151 = vadd.f32 %v1141, %v1149
    %v1152 = vtanh.pop %v1151
    %1154 = vrot.lane.b32.xlu0 %v1152, 8
    %v1155 = vpop.permute.xlu0 %1154
    %v1157 = vmul.f32 %v1136, %v1155
    %1159 = vrot.lane.b32.xlu0 %v1157, 112
    %v1160 = vpop.permute.xlu0 %1159
    %1162 = vst.msk [vmem:[#allocation3] sm:$0xc0] %vm553, %v1160
    %v1163 = vrot.slane %v1157, 6
    %1164 = vrot.lane.b32.xlu0 %v1163, 112
    %v1165 = vpop.permute.xlu0 %1164
    %v1166 = vsel %vm265, %v1165, 0
    %1168 = vmatpush.msra.mxu0 0.0
    %1169 = vmatpush.msra.mxu0 0.0
    %1170 = vmatpush.msra.mxu0 0.0
    %1171 = vmatpush.msra.mxu0 0.0
    %1172 = vmatpush.msra.mxu0 0.0
    %1173 = vmatpush.msra.mxu0 0.0
    %1174 = vmatpush.msra.mxu0 0.0
    %1175 = vmatpush.msra.mxu0 0.0
    %1176 = vmatpush.msra.mxu0 0.0
    %1177 = vmatpush.msra.mxu0 0.0
    %1178 = vmatpush.msra.mxu0 0.0
    %1179 = vmatpush.msra.mxu0 0.0
    %1180 = vmatpush.msra.mxu0 0.0
    %1181 = vmatpush.msra.mxu0 0.0
    %1182 = vmatpush.msra.mxu0 0.0
    %1183 = vmatpush.msra.mxu0 %v264
    %1184 = vmatmul.f32.gmra.mxu0 %v1166
    %v1185 = vpop.f32.mrf.mxu0
    %v1186 = vadd.f32 0.0, %v1185
    %1187 = vdwg.mxu0
    %v1188 = vadd.f32 %v879, %v1186
    %v1189 = vxor.u32 %v1188, 2147483648
    %v1190 = vmul.f32 %v1189, 1.442695
    %v1191 = vpow.pop %v1190
    %v1192 = vadd.f32 %v1191, 1.0
    %v1193 = vrcp.pop %v1192
    %v1194 = vmul.f32 %v1192, %v1193
    %v1195 = vsub.f32 1.0, %v1194
    %v1196 = vmul.f32 %v1193, %v1195
    %v1197 = vadd.f32 %v1193, %v1196
    %vm1198 = vweird.f32 %v1192
    %vm1199 = vweird.f32 %v1193
    %vm1200 = vmor %vm1198, %vm1199
    %v1201 = vsel %vm1200, %v1193, %v1197
    %v1202 = vand.u32 2147483647, %v1192
    %vm1203 = vcmp.eq.f32.partialorder %v1202, 8.507059e+37
    %v1204 = vand.u32 %v1192, 2147483648
    %v1205 = vor.u32 1.1754944e-38, %v1204
    %v1206 = vsel %vm1203, %v1205, %v1201
    %v1207 = vmul.f32 1.0, %v1206
    %v1208 = vtanh.pop %v1188
    %v1210 = vrot.slane %v1151, 6
    %v1212 = vmul.f32 %v1207, %v1210
    %1214 = vrot.lane.b32.xlu0 %v1208, 104
    %v1215 = vpop.permute.xlu0 %1214
    %v1217 = vmul.f32 %v1207, %v1215
    %1219 = vrot.lane.b32.xlu0 %v1217, 8
    %v1220 = vpop.permute.xlu0 %1219
    %v1222 = vadd.f32 %v1212, %v1220
    %v1223 = vtanh.pop %v1222
    %1225 = vrot.lane.b32.xlu0 %v1223, 8
    %v1226 = vpop.permute.xlu0 %1225
    %v1228 = vmul.f32 %v1207, %v1226
    %1230 = vrot.lane.b32.xlu0 %v1228, 112
    %v1231 = vpop.permute.xlu0 %1230
    %1233 = vst.msk [vmem:[#allocation3 + $0x8] sm:$0x3] %vm331, %v1231
    %v1234 = vsel %vm265, %v1231, 0
    %1236 = vmatpush.msra.mxu0 0.0
    %1237 = vmatpush.msra.mxu0 0.0
    %1238 = vmatpush.msra.mxu0 0.0
    %1239 = vmatpush.msra.mxu0 0.0
    %1240 = vmatpush.msra.mxu0 0.0
    %1241 = vmatpush.msra.mxu0 0.0
    %1242 = vmatpush.msra.mxu0 0.0
    %1243 = vmatpush.msra.mxu0 0.0
    %1244 = vmatpush.msra.mxu0 0.0
    %1245 = vmatpush.msra.mxu0 0.0
    %1246 = vmatpush.msra.mxu0 0.0
    %1247 = vmatpush.msra.mxu0 0.0
    %1248 = vmatpush.msra.mxu0 0.0
    %1249 = vmatpush.msra.mxu0 0.0
    %1250 = vmatpush.msra.mxu0 0.0
    %1251 = vmatpush.msra.mxu0 %v264
    %1252 = vmatmul.f32.gmra.mxu0 %v1234
    %v1253 = vpop.f32.mrf.mxu0
    %v1254 = vadd.f32 0.0, %v1253
    %1255 = vdwg.mxu0
    %v1257 = vrot.slane %v1254, 6
    %v1259 = vadd.f32 %v879, %v1257
    %v1260 = vxor.u32 %v1259, 2147483648
    %v1261 = vmul.f32 %v1260, 1.442695
    %v1262 = vpow.pop %v1261
    %v1263 = vadd.f32 %v1262, 1.0
    %v1264 = vrcp.pop %v1263
    %v1265 = vmul.f32 %v1263, %v1264
    %v1266 = vsub.f32 1.0, %v1265
    %v1267 = vmul.f32 %v1264, %v1266
    %v1268 = vadd.f32 %v1264, %v1267
    %vm1269 = vweird.f32 %v1263
    %vm1270 = vweird.f32 %v1264
    %vm1271 = vmor %vm1269, %vm1270
    %v1272 = vsel %vm1271, %v1264, %v1268
    %v1273 = vand.u32 2147483647, %v1263
    %vm1274 = vcmp.eq.f32.partialorder %v1273, 8.507059e+37
    %v1275 = vand.u32 %v1263, 2147483648
    %v1276 = vor.u32 1.1754944e-38, %v1275
    %v1277 = vsel %vm1274, %v1276, %v1272
    %v1278 = vmul.f32 1.0, %v1277
    %v1279 = vtanh.pop %v1259
    %v1281 = vrot.slane %v1222, 6
    %v1283 = vmul.f32 %v1278, %v1281
    %1285 = vrot.lane.b32.xlu0 %v1279, 104
    %v1286 = vpop.permute.xlu0 %1285
    %v1288 = vmul.f32 %v1278, %v1286
    %1290 = vrot.lane.b32.xlu0 %v1288, 8
    %v1291 = vpop.permute.xlu0 %1290
    %v1293 = vadd.f32 %v1283, %v1291
    %v1294 = vtanh.pop %v1293
    %1296 = vrot.lane.b32.xlu0 %v1294, 8
    %v1297 = vpop.permute.xlu0 %1296
    %v1299 = vmul.f32 %v1278, %v1297
    %1301 = vrot.lane.b32.xlu0 %v1299, 112
    %v1302 = vpop.permute.xlu0 %1301
    %1304 = vst.msk [vmem:[#allocation3 + $0x8] sm:$0xc] %vm403, %v1302
    %v1305 = vrot.slane %v1299, 2
    %1306 = vrot.lane.b32.xlu0 %v1305, 112
    %v1307 = vpop.permute.xlu0 %1306
    %v1308 = vsel %vm265, %v1307, 0
    %1310 = vmatpush.msra.mxu0 0.0
    %1311 = vmatpush.msra.mxu0 0.0
    %1312 = vmatpush.msra.mxu0 0.0
    %1313 = vmatpush.msra.mxu0 0.0
    %1314 = vmatpush.msra.mxu0 0.0
    %1315 = vmatpush.msra.mxu0 0.0
    %1316 = vmatpush.msra.mxu0 0.0
    %1317 = vmatpush.msra.mxu0 0.0
    %1318 = vmatpush.msra.mxu0 0.0
    %1319 = vmatpush.msra.mxu0 0.0
    %1320 = vmatpush.msra.mxu0 0.0
    %1321 = vmatpush.msra.mxu0 0.0
    %1322 = vmatpush.msra.mxu0 0.0
    %1323 = vmatpush.msra.mxu0 0.0
    %1324 = vmatpush.msra.mxu0 0.0
    %1325 = vmatpush.msra.mxu0 %v264
    %1326 = vmatmul.f32.gmra.mxu0 %v1308
    %v1327 = vpop.f32.mrf.mxu0
    %v1328 = vadd.f32 0.0, %v1327
    %1329 = vdwg.mxu0
    %v1331 = vrot.slane %v1328, 4
    %v1333 = vadd.f32 %v879, %v1331
    %v1334 = vxor.u32 %v1333, 2147483648
    %v1335 = vmul.f32 %v1334, 1.442695
    %v1336 = vpow.pop %v1335
    %v1337 = vadd.f32 %v1336, 1.0
    %v1338 = vrcp.pop %v1337
    %v1339 = vmul.f32 %v1337, %v1338
    %v1340 = vsub.f32 1.0, %v1339
    %v1341 = vmul.f32 %v1338, %v1340
    %v1342 = vadd.f32 %v1338, %v1341
    %vm1343 = vweird.f32 %v1337
    %vm1344 = vweird.f32 %v1338
    %vm1345 = vmor %vm1343, %vm1344
    %v1346 = vsel %vm1345, %v1338, %v1342
    %v1347 = vand.u32 2147483647, %v1337
    %vm1348 = vcmp.eq.f32.partialorder %v1347, 8.507059e+37
    %v1349 = vand.u32 %v1337, 2147483648
    %v1350 = vor.u32 1.1754944e-38, %v1349
    %v1351 = vsel %vm1348, %v1350, %v1346
    %v1352 = vmul.f32 1.0, %v1351
    %v1353 = vtanh.pop %v1333
    %v1355 = vrot.slane %v1293, 6
    %v1357 = vmul.f32 %v1352, %v1355
    %1359 = vrot.lane.b32.xlu0 %v1353, 104
    %v1360 = vpop.permute.xlu0 %1359
    %v1362 = vmul.f32 %v1352, %v1360
    %1364 = vrot.lane.b32.xlu0 %v1362, 8
    %v1365 = vpop.permute.xlu0 %1364
    %v1367 = vadd.f32 %v1357, %v1365
    %v1368 = vtanh.pop %v1367
    %1370 = vrot.lane.b32.xlu0 %v1368, 8
    %v1371 = vpop.permute.xlu0 %1370
    %v1373 = vmul.f32 %v1352, %v1371
    %1375 = vrot.lane.b32.xlu0 %v1373, 112
    %v1376 = vpop.permute.xlu0 %1375
    %1378 = vst.msk [vmem:[#allocation3 + $0x8] sm:$0x30] %vm478, %v1376
    %v1379 = vrot.slane %v1373, 4
    %1380 = vrot.lane.b32.xlu0 %v1379, 112
    %v1381 = vpop.permute.xlu0 %1380
    %v1382 = vsel %vm265, %v1381, 0
    %1384 = vmatpush.msra.mxu0 0.0
    %1385 = vmatpush.msra.mxu0 0.0
    %1386 = vmatpush.msra.mxu0 0.0
    %1387 = vmatpush.msra.mxu0 0.0
    %1388 = vmatpush.msra.mxu0 0.0
    %1389 = vmatpush.msra.mxu0 0.0
    %1390 = vmatpush.msra.mxu0 0.0
    %1391 = vmatpush.msra.mxu0 0.0
    %1392 = vmatpush.msra.mxu0 0.0
    %1393 = vmatpush.msra.mxu0 0.0
    %1394 = vmatpush.msra.mxu0 0.0
    %1395 = vmatpush.msra.mxu0 0.0
    %1396 = vmatpush.msra.mxu0 0.0
    %1397 = vmatpush.msra.mxu0 0.0
    %1398 = vmatpush.msra.mxu0 0.0
    %1399 = vmatpush.msra.mxu0 %v264
    %1400 = vmatmul.f32.gmra.mxu0 %v1382
    %v1401 = vpop.f32.mrf.mxu0
    %v1402 = vadd.f32 0.0, %v1401
    %1403 = vdwg.mxu0
    %v1405 = vrot.slane %v1402, 2
    %v1407 = vadd.f32 %v879, %v1405
    %v1408 = vxor.u32 %v1407, 2147483648
    %v1409 = vmul.f32 %v1408, 1.442695
    %v1410 = vpow.pop %v1409
    %v1411 = vadd.f32 %v1410, 1.0
    %v1412 = vrcp.pop %v1411
    %v1413 = vmul.f32 %v1411, %v1412
    %v1414 = vsub.f32 1.0, %v1413
    %v1415 = vmul.f32 %v1412, %v1414
    %v1416 = vadd.f32 %v1412, %v1415
    %vm1417 = vweird.f32 %v1411
    %vm1418 = vweird.f32 %v1412
    %vm1419 = vmor %vm1417, %vm1418
    %v1420 = vsel %vm1419, %v1412, %v1416
    %v1421 = vand.u32 2147483647, %v1411
    %vm1422 = vcmp.eq.f32.partialorder %v1421, 8.507059e+37
    %v1423 = vand.u32 %v1411, 2147483648
    %v1424 = vor.u32 1.1754944e-38, %v1423
    %v1425 = vsel %vm1422, %v1424, %v1420
    %v1426 = vmul.f32 1.0, %v1425
    %v1427 = vtanh.pop %v1407
    %v1429 = vrot.slane %v1367, 6
    %v1431 = vmul.f32 %v1426, %v1429
    %1433 = vrot.lane.b32.xlu0 %v1427, 104
    %v1434 = vpop.permute.xlu0 %1433
    %v1436 = vmul.f32 %v1426, %v1434
    %1438 = vrot.lane.b32.xlu0 %v1436, 8
    %v1439 = vpop.permute.xlu0 %1438
    %v1441 = vadd.f32 %v1431, %v1439
    %v1442 = vtanh.pop %v1441
    %1444 = vrot.lane.b32.xlu0 %v1442, 8
    %v1445 = vpop.permute.xlu0 %1444
    %v1447 = vmul.f32 %v1426, %v1445
    %1449 = vrot.lane.b32.xlu0 %v1447, 112
    %v1450 = vpop.permute.xlu0 %1449
    %1452 = vst.msk [vmem:[#allocation3 + $0x8] sm:$0xc0] %vm553, %v1450
    %v1453 = vlaneseq
    %v1454 = vshrl.u32 %v1453, 7
    %v1455 = vmul.u32 %v1454, 2
    %vm1456 = vcmp.ge.s32.totalorder %v95, %v1455
    %v1457 = vadd.s32 %v1454, 1
    %v1458 = vmul.u32 %v1457, 2
    %vm1459 = vcmp.lt.s32.totalorder %v95, %v1458
    %vm1460 = vmand %vm1456, %vm1459
    %v1461 = vsel %vm1460, 0.5, 0.0
    %v1462 = vld [vmem:[#allocation3] sm:$0xff]
    %v1463 = vld [vmem:[#allocation3 + $0x8] sm:$0xff]
    %v1465 = vsel %vm110, %v1461, 0
    %1467 = vmatpush.msra.mxu0 0.0
    %1468 = vmatpush.msra.mxu0 0.0
    %1469 = vmatpush.msra.mxu0 0.0
    %1470 = vmatpush.msra.mxu0 0.0
    %1471 = vmatpush.msra.mxu0 0.0
    %1472 = vmatpush.msra.mxu0 0.0
    %1473 = vmatpush.msra.mxu0 0.0
    %1474 = vmatpush.msra.mxu0 0.0
    %1475 = vmatpush.msra.mxu0 0.0
    %1476 = vmatpush.msra.mxu0 0.0
    %1477 = vmatpush.msra.mxu0 0.0
    %1478 = vmatpush.msra.mxu0 0.0
    %1479 = vmatpush.msra.mxu0 0.0
    %1480 = vmatpush.msra.mxu0 0.0
    %1481 = vmatpush.msra.mxu0 %v1463
    %1482 = vmatpush.msra.mxu0 %v1462
    %1483 = vmatmul.f32.gmra.mxu0 %v1465
    %v1484 = vpop.f32.mrf.mxu0
    %v1485 = vadd.f32 0.0, %v1484
    %1486 = vdwg.mxu0
    %v1487 = vld [vmem:[#allocation10] sm:$0xff]
    %v1488 = vld [vmem:[%s10] sm:$0x1]
    %v1490 = vperm.slane %v1488, 0
    %v1493 = vsel %vm265, %v1485, 0
    %1495 = vmatpush.msra.mxu0 0.0
    %1496 = vmatpush.msra.mxu0 0.0
    %1497 = vmatpush.msra.mxu0 0.0
    %1498 = vmatpush.msra.mxu0 0.0
    %1499 = vmatpush.msra.mxu0 0.0
    %1500 = vmatpush.msra.mxu0 0.0
    %1501 = vmatpush.msra.mxu0 0.0
    %1502 = vmatpush.msra.mxu0 0.0
    %1503 = vmatpush.msra.mxu0 0.0
    %1504 = vmatpush.msra.mxu0 0.0
    %1505 = vmatpush.msra.mxu0 0.0
    %1506 = vmatpush.msra.mxu0 0.0
    %1507 = vmatpush.msra.mxu0 0.0
    %1508 = vmatpush.msra.mxu0 0.0
    %1509 = vmatpush.msra.mxu0 0.0
    %1510 = vmatpush.msra.mxu0 %v1487
    %1511 = vmatmul.f32.gmra.mxu0 %v1493
    %v1512 = vpop.f32.mrf.mxu0
    %v1513 = vadd.f32 %v1490, %v1512
    %1514 = vdwg.mxu0
    %v1515 = vld [vmem:[%s11] sm:$0xff]
    %v1516 = vld [vmem:[%s11 + $0x8] sm:$0xff]
    %v1517 = vld [vmem:[%s11 + $0x10] sm:$0xff]
    %v1518 = vld [vmem:[%s11 + $0x18] sm:$0xff]
    %v1519 = vld [vmem:[%s12] sm:$0x1]
    %v1521 = vperm.slane %v1519, 0
    %vm1523 = vcmask 261120
    %v1525 = vsel %vm1523, %v1513, 0
    %1527 = vmatpush.msra.mxu0 0.0
    %1528 = vmatpush.msra.mxu0 0.0
    %1529 = vmatpush.msra.mxu0 0.0
    %1530 = vmatpush.msra.mxu0 0.0
    %1531 = vmatpush.msra.mxu0 0.0
    %1532 = vmatpush.msra.mxu0 0.0
    %1533 = vmatpush.msra.mxu0 0.0
    %1534 = vmatpush.msra.mxu0 0.0
    %1535 = vmatpush.msra.mxu0 0.0
    %1536 = vmatpush.msra.mxu0 0.0
    %1537 = vmatpush.msra.mxu0 0.0
    %1538 = vmatpush.msra.mxu0 0.0
    %1539 = vmatpush.msra.mxu0 %v1518
    %1540 = vmatpush.msra.mxu0 %v1517
    %1541 = vmatpush.msra.mxu0 %v1516
    %1542 = vmatpush.msra.mxu0 %v1515
    %1543 = vmatmul.f32.gmra.mxu0 %v1525
    %v1544 = vpop.f32.mrf.mxu0
    %v1545 = vadd.f32 %v1521, %v1544
    %1546 = vdwg.mxu0
    %1547 = vst [vmem:[#allocation11] sm:$0xff] %v1545
    %1548 = vst.msk [vmem:[#allocation12 - $0x6] sm:$0xc0] %vm553, %v1450
    %1550 = vrot.lane.b32.xlu0 %v1441, 120
    %v1551 = vpop.permute.xlu0 %1550
    %1553 = vst.msk [vmem:[#allocation14 - $0x6] sm:$0xc0] %vm553, %v1551
    // Predicated region
    $region66: #{tpu_custom_call.1} parent=1 // pred_check
      _
    $region67: #{tpu_custom_call.1} parent=1 // pred_check_branch
      %1555 = sbr.rel (0) target = $region69
    $region68: #{tpu_custom_call.1} parent=1 // pred_region
      %1557 = vsyncadd [#allocation7], 0
      %s1559 = sshll.u32 [#allocation11], 4
      %s1560 = int_to_ptr.vmem [resolvable:$true] %s1559
      %s1561 = sshll.u32 %s13, 4
      %s1562 = int_to_ptr.hbm [resolvable:$true] %s1561
      %1564 = dma.vmem_to_hbm [thread:$0]  %s1560, 128, %s1562, [#allocation7]
    $region69: #{tpu_custom_call.1} parent=1 // pred_fallthru
      _
    // Predicated region
    $region70: #{tpu_custom_call.1} parent=1 // pred_check
      _
    $region71: #{tpu_custom_call.1} parent=1 // pred_check_branch
      %1566 = sbr.rel (0) target = $region73
    $region72: #{tpu_custom_call.1} parent=1 // pred_region
      %1568 = vsyncadd [#allocation13], 0
      %s1570 = sshll.u32 [#allocation12], 4
      %s1571 = int_to_ptr.vmem [resolvable:$true] %s1570
      %s1572 = sshll.u32 %s14, 4
      %s1573 = int_to_ptr.hbm [resolvable:$true] %s1572
      %1575 = dma.vmem_to_hbm [thread:$0]  %s1571, 32, %s1573, [#allocation13]
    $region73: #{tpu_custom_call.1} parent=1 // pred_fallthru
      _
    // Predicated region
    $region74: #{tpu_custom_call.1} parent=1 // pred_check
      _
    $region75: #{tpu_custom_call.1} parent=1 // pred_check_branch
      %1577 = sbr.rel (0) target = $region77
    $region76: #{tpu_custom_call.1} parent=1 // pred_region
      %1579 = vsyncadd [#allocation13], 0
      %s1581 = sshll.u32 [#allocation14], 4
      %s1582 = int_to_ptr.vmem [resolvable:$true] %s1581
      %s1583 = sshll.u32 %s15, 4
      %s1584 = int_to_ptr.hbm [resolvable:$true] %s1583
      %1586 = dma.vmem_to_hbm [thread:$0]  %s1582, 32, %s1584, [#allocation13]
    $region77: #{tpu_custom_call.1} parent=1 // pred_fallthru
      _
    // Predicated region
    $region78: #{tpu_custom_call.1} parent=1 // pred_check
      _
    $region79: #{tpu_custom_call.1} parent=1 // pred_check_branch
      %1588 = sbr.rel (0) target = $region81
    $region80: #{tpu_custom_call.1} parent=1 // pred_region
      %1590 = dma.done [#allocation7], 128
    $region81: #{tpu_custom_call.1} parent=1 // pred_fallthru
      _
    // Predicated region
    $region82: #{tpu_custom_call.1} parent=1 // pred_check
      _
    $region83: #{tpu_custom_call.1} parent=1 // pred_check_branch
      %1592 = sbr.rel (0) target = $region85
    $region84: #{tpu_custom_call.1} parent=1 // pred_region
      %1594 = dma.done [#allocation13], 32
    $region85: #{tpu_custom_call.1} parent=1 // pred_fallthru
      _
    // Predicated region
    $region86: #{tpu_custom_call.1} parent=1 // pred_check
      _
    $region87: #{tpu_custom_call.1} parent=1 // pred_check_branch
      %1596 = sbr.rel (0) target = $region89
    $region88: #{tpu_custom_call.1} parent=1 // pred_region
      %1598 = dma.done [#allocation13], 32
    $region89: #{tpu_custom_call.1} parent=1 // pred_fallthru
      _
    %1599 = vsyncpa [#allocation6], 1
    %1600 = vsyncpa [#allocation9], 1
    %1601 = vsyncpa [#allocation7], 1
    %1602 = vsyncpa [#allocation13], 1

</llo_original>
